<compile_context>
chip_gen: v6e
topology: v6e:2x2x1
jax: 0.10.0
libtpu: 0.0.40
codegen_flags: <defaults>
</compile_context>

<pallas_src>
import functools

import jax
import jax.numpy as jnp
import numpy as np
from jax.experimental import pallas as pl
from jax.experimental.pallas import tpu as pltpu

CPAD = 128  # conv output channels padded to one full lane register (lane-dense stores)


def _round_up(n, m):
    return ((n + m - 1) // m) * m


@functools.lru_cache(maxsize=1)
def _vmem_limit_bytes():
    """Generation-aware scoped-VMEM cap: ~3/4 of physical VMEM, capped at 96 MiB."""
    try:
        cap = pltpu.get_tpu_info().vmem_capacity_bytes
    except Exception:
        return 32 * 1024 * 1024          # conservative fallback, safe on v5e/v6e/v7x
    return int(min((cap * 3) // 4, 96 * 1024 * 1024))


def _pick_tile(M, K, *, act_bytes=1 << 20, cap=1024):
    """Pick the M-tile for a [M,K]@[K,N] GEMM streamed over M.

    Large enough to amortize the ~0.35us per-grid-step overhead, small enough that the
    streamed bf16 activation tile stays ~<=1 MiB (double-buffered ~2 MiB), rounded to
    16 sublanes (bf16 packing), and clamped so the grid has >=2 steps whenever M allows
    it so that v7x's two TensorCores both get work.
    """
    if M <= 32:
        return M                                    # tiny problem: one full block
    tm = min(cap, max(128, act_bytes // (2 * K)))
    tm = max(16, (tm // 16) * 16)
    tm = min(tm, _round_up(pl.cdiv(M, 2), 16))      # >= 2 grid steps
    return min(tm, M)


# ----------------------------- Pallas kernels -----------------------------

def _gemm_bias_relu_kernel(x_ref, w_ref, b_ref, o_ref, *, relu):
    """o = relu(x @ w + b); bf16 operands on the MXU, f32 accumulation + epilogue."""
    y = jnp.dot(x_ref[...], w_ref[...], preferred_element_type=jnp.float32)
    y = y + b_ref[...]
    if relu:
        y = jnp.maximum(y, 0.0)
    o_ref[...] = y.astype(o_ref.dtype)


def pallas_gemm_bias_relu(x, w, b, *, relu=True, out_dtype=jnp.bfloat16):
    """x: [M, K] bf16, w: [K, N] bf16, b: [1, N] f32 -> [M, N] out_dtype, tiled over M."""
    M, K = x.shape
    K2, N = w.shape
    assert K == K2 and b.shape == (1, N)

    TM = _pick_tile(M, K)
    kernel = functools.partial(_gemm_bias_relu_kernel, relu=relu)
    return pl.pallas_call(
        kernel,
        out_shape=jax.ShapeDtypeStruct((M, N), out_dtype),
        grid=(pl.cdiv(M, TM),),
        in_specs=[
            pl.BlockSpec((TM, K), lambda i: (i, 0)),   # activations: streamed over M
            pl.BlockSpec((K, N), lambda i: (0, 0)),    # weights: grid-invariant (no re-DMA)
            pl.BlockSpec((1, N), lambda i: (0, 0)),    # bias: grid-invariant
        ],
        out_specs=pl.BlockSpec((TM, N), lambda i: (i, 0)),
        compiler_params=pltpu.CompilerParams(
            dimension_semantics=("parallel",),
            vmem_limit_bytes=_vmem_limit_bytes(),
        ),
        cost_estimate=pl.CostEstimate(
            flops=2 * M * K * N,
            transcendentals=0,
            bytes_accessed=M * K * 2 + K * N * 2 + N * 4 + M * N * 2,
        ),
    )(x, w, b)


def _fc_head_kernel(x_ref, wf_ref, bf_ref, wh_ref, bh_ref, q_ref):
    """Fused tail: feat = relu(x @ wf + bf); q = feat @ wh + bh (feat never leaves VMEM)."""
    feat = jnp.dot(x_ref[...], wf_ref[...], preferred_element_type=jnp.float32)
    feat = jnp.maximum(feat + bf_ref[...], 0.0)
    q = jnp.dot(feat.astype(jnp.bfloat16), wh_ref[...],
                preferred_element_type=jnp.float32)
    q_ref[...] = q + bh_ref[...]


def pallas_fc_head(x, wf, bf, wh, bh):
    """x: [B, Kf] bf16 -> q: [B, Npad] f32 (fused 512-unit FC + value head)."""
    B, Kf = x.shape
    Kf2, H = wf.shape
    H2, Np = wh.shape
    assert Kf == Kf2 and H == H2

    TB = _pick_tile(B, Kf, cap=256)
    return pl.pallas_call(
        _fc_head_kernel,
        out_shape=jax.ShapeDtypeStruct((B, Np), jnp.float32),
        grid=(pl.cdiv(B, TB),),
        in_specs=[
            pl.BlockSpec((TB, Kf), lambda i: (i, 0)),
            pl.BlockSpec((Kf, H), lambda i: (0, 0)),
            pl.BlockSpec((1, H), lambda i: (0, 0)),
            pl.BlockSpec((H, Np), lambda i: (0, 0)),
            pl.BlockSpec((1, Np), lambda i: (0, 0)),
        ],
        out_specs=pl.BlockSpec((TB, Np), lambda i: (i, 0)),
        compiler_params=pltpu.CompilerParams(
            dimension_semantics=("parallel",),
            vmem_limit_bytes=_vmem_limit_bytes(),
        ),
        cost_estimate=pl.CostEstimate(
            flops=2 * B * Kf * H + 2 * B * H * Np,
            transcendentals=0,
            bytes_accessed=(B * Kf * 2 + Kf * H * 2 + H * 4
                            + H * Np * 2 + Np * 4 + B * Np * 4),
        ),
    )(x, wf, bf, wh, bh)


# ----------------------------- JAX glue ------------------------------------

def _conv_out(n, k, s):
    return (n - k) // s + 1


def _im2col_nhwc(x, k, s):
    """x: [B, H, W, C] -> patches [B*Ho*Wo, k*k*C], column order (kh, kw, C)."""
    B, H, W, C = x.shape
    Ho, Wo = _conv_out(H, k, s), _conv_out(W, k, s)
    cols = []
    for dh in range(k):
        for dw in range(k):
            cols.append(x[:, dh:dh + s * (Ho - 1) + 1:s, dw:dw + s * (Wo - 1) + 1:s, :])
    p = jnp.stack(cols, axis=3)                      # [B, Ho, Wo, k*k, C]
    return p.reshape(B * Ho * Wo, k * k * C), Ho, Wo


def init_params(key, in_c, h, w, num_actions):
    """Deterministic synthetic weights in PyTorch layouts (OIHW conv, [out, in] linear)."""
    h1, w1 = _conv_out(h, 8, 4), _conv_out(w, 8, 4)
    h2, w2 = _conv_out(h1, 4, 2), _conv_out(w1, 4, 2)
    h3, w3 = _conv_out(h2, 3, 1), _conv_out(w2, 3, 1)
    flat = 64 * h3 * w3

    ks = jax.random.split(key, 10)

    def init_w(k, shape):
        fan_in = int(np.prod(shape[1:]))
        return jax.random.normal(k, shape, jnp.float32) / np.sqrt(fan_in)

    def init_b(k, n):
        return jax.random.normal(k, (n,), jnp.float32) * 0.01

    return {
        'conv1_w': init_w(ks[0], (32, in_c, 8, 8)), 'conv1_b': init_b(ks[1], 32),
        'conv2_w': init_w(ks[2], (64, 32, 4, 4)),   'conv2_b': init_b(ks[3], 64),
        'conv3_w': init_w(ks[4], (64, 64, 3, 3)),   'conv3_b': init_b(ks[5], 64),
        'fc_w':    init_w(ks[6], (512, flat)),      'fc_b':    init_b(ks[7], 512),
        'head_w':  init_w(ks[8], (num_actions, 512)),
        'head_b':  init_b(ks[9], num_actions),
    }


def prepare_params(params, h, w):
    """One-time packing of PyTorch-layout weights into MXU-friendly GEMM operands.

    Input channels are kept at their REAL count (K-depadding); only output channels are
    padded to 128 so every kernel writes lane-dense blocks.
    """
    h1, w1 = _conv_out(h, 8, 4), _conv_out(w, 8, 4)
    h2, w2 = _conv_out(h1, 4, 2), _conv_out(w1, 4, 2)
    h3, w3 = _conv_out(h2, 3, 1), _conv_out(w2, 3, 1)

    def pack_conv(w_oihw, b, scale=1.0):
        O, I, kh, kw = w_oihw.shape
        wk = jnp.transpose(w_oihw * scale, (2, 3, 1, 0))            # [kh, kw, I, O]
        wk = jnp.pad(wk, ((0, 0), (0, 0), (0, 0), (0, CPAD - O)))   # pad N (lanes) only
        wk = wk.reshape(kh * kw * I, CPAD)
        bk = jnp.pad(b, (0, CPAD - O)).reshape(1, CPAD)
        return wk.astype(jnp.bfloat16), bk.astype(jnp.float32)

    # conv1: fold the 1/255 frame scaling into the packed weight.
    w1m, b1 = pack_conv(params['conv1_w'], params['conv1_b'], scale=1.0 / 255.0)
    w2m, b2 = pack_conv(params['conv2_w'], params['conv2_b'])       # K = 4*4*32 = 512
    w3m, b3 = pack_conv(params['conv3_w'], params['conv3_b'])       # K = 3*3*64 = 576

    # FC: torch flattens NCHW -> columns ordered (C, h, w); our flatten is NHWC (h, w, C).
    fw = params['fc_w'].reshape(512, 64, h3, w3)
    fw = jnp.transpose(fw, (0, 2, 3, 1)).reshape(512, h3 * w3 * 64)
    fw = fw.T.astype(jnp.bfloat16)                                  # [h3*w3*64, 512]
    fb = params['fc_b'].reshape(1, 512).astype(jnp.float32)

    # value head: [A, 512] -> [512, A_pad] (lane-dense output, pad sliced off in JAX)
    A = params['head_w'].shape[0]
    apad = _round_up(A, 128)
    hw = jnp.pad(params['head_w'].T, ((0, 0), (0, apad - A))).astype(jnp.bfloat16)
    hb = jnp.pad(params['head_b'], (0, apad - A)).reshape(1, apad).astype(jnp.float32)

    return {'w1': w1m, 'b1': b1, 'w2': w2m, 'b2': b2, 'w3': w3m, 'b3': b3,
            'fc_w': fw, 'fc_b': fb, 'head_w': hw, 'head_b': hb}


@functools.partial(jax.jit, static_argnums=(2,))
def dqn_forward(packed, x, num_actions):
    """Pallas forward pass.  x: [B, C, H, W] uint8/float -> q_values [B, num_actions]."""
    B = x.shape[0]
    # NCHW -> NHWC bf16 (uint8 values are exact in bf16; 1/255 lives in conv1's weights).
    xh = jnp.transpose(x, (0, 2, 3, 1)).astype(jnp.bfloat16)

    p1, h1, w1 = _im2col_nhwc(xh, 8, 4)                          # K = 8*8*C
    y1 = pallas_gemm_bias_relu(p1, packed['w1'], packed['b1'])   # [B*h1*w1, 128]
    y1 = y1[:, :32].reshape(B, h1, w1, 32)                       # depad: next K 2048->512

    p2, h2, w2 = _im2col_nhwc(y1, 4, 2)
    y2 = pallas_gemm_bias_relu(p2, packed['w2'], packed['b2'])   # [B*h2*w2, 128]
    y2 = y2[:, :64].reshape(B, h2, w2, 64)                       # depad: next K 1152->576

    p3, h3, w3 = _im2col_nhwc(y2, 3, 1)
    y3 = pallas_gemm_bias_relu(p3, packed['w3'], packed['b3'])   # [B*h3*w3, 128]

    flat = y3[:, :64].reshape(B, h3 * w3 * 64)                   # depad: FC K halved
    q = pallas_fc_head(flat, packed['fc_w'], packed['fc_b'],
                       packed['head_w'], packed['head_b'])
    return q[:, :num_actions]


def reference_forward(params, x):
    """Pure-JAX f32 reference mirroring the PyTorch DqnConvNet semantics exactly."""
    xf = x.astype(jnp.float32) / 255.0

    def conv(z, w, b, s):
        y = jax.lax.conv_general_dilated(
            z, w, window_strides=(s, s), padding='VALID',
            dimension_numbers=('NCHW', 'OIHW', 'NCHW'))
        return jax.nn.relu(y + b[None, :, None, None])

    y = conv(xf, params['conv1_w'], params['conv1_b'], 4)
    y = conv(y, params['conv2_w'], params['conv2_b'], 2)
    y = conv(y, params['conv3_w'], params['conv3_b'], 1)
    flat = y.reshape(y.shape[0], -1)
    feat = jax.nn.relu(flat @ params['fc_w'].T + params['fc_b'])
    return feat @ params['head_w'].T + params['head_b']


if __name__ == "__main__":
    B, C, H, W = 2, 4, 36, 36          # small Atari-like stacked frames (min valid H/W)
    num_actions = 6

    key = jax.random.PRNGKey(0)
    k_x, k_p = jax.random.split(key)
    x = jax.random.randint(k_x, (B, C, H, W), 0, 256, dtype=jnp.int32).astype(jnp.uint8)
    params = init_params(k_p, C, H, W, num_actions)
    packed = prepare_params(params, H, W)          # one-time weight packing (not per call)

    q_values = dqn_forward(packed, x, num_actions)
    jax.block_until_ready(q_values)
    assert q_values.shape == (B, num_actions)

    q_ref = reference_forward(params, x)
    np.testing.assert_allclose(np.asarray(q_values), np.asarray(q_ref), rtol=3e-2, atol=3e-2)

    print("KERNEL_OK")
</pallas_src>

<mosaic_0001>
module attributes {stable_mosaic.version = 11 : i64} {
  func.func @_gemm_bias_relu_kernel(%arg0: i32, %arg1: memref<64x256xbf16, #tpu.memory_space<vmem>>, %arg2: memref<256x128xbf16, #tpu.memory_space<vmem>>, %arg3: memref<1x128xf32, #tpu.memory_space<vmem>>, %arg4: memref<64x128xbf16, #tpu.memory_space<vmem>>) attributes {dimension_semantics = [#tpu.dimension_semantics<parallel>], iteration_bounds = array<i64: 2>, scalar_prefetch = 0 : i64, scratch_operands = 0 : i64, tpu.core_type = #tpu.core_type<tc>, window_params = [{transform_indices = @transform_0, window_bounds = array<i64: 64, 256>}, {pipeline_mode = #tpu.pipeline_mode<synchronous>, transform_indices = @transform_1, window_bounds = array<i64: 256, 128>}, {pipeline_mode = #tpu.pipeline_mode<synchronous>, transform_indices = @transform_2, window_bounds = array<i64: 1, 128>}, {transform_indices = @transform_3, window_bounds = array<i64: 64, 128>}]} {
    %c0 = arith.constant 0 : index
    %c0_0 = arith.constant 0 : index
    %0 = vector.load %arg1[%c0, %c0_0] : memref<64x256xbf16, #tpu.memory_space<vmem>>, vector<64x256xbf16>
    %c0_1 = arith.constant 0 : index
    %c0_2 = arith.constant 0 : index
    %1 = vector.load %arg2[%c0_1, %c0_2] : memref<256x128xbf16, #tpu.memory_space<vmem>>, vector<256x128xbf16>
    %cst = arith.constant dense<0.000000e+00> : vector<64x128xf32>
    %2 = tpu.matmul %0, %1, %cst {dimension_numbers = #tpu.dot_dimension_numbers<[1], [0], [0], [1], [0, 0, 1, 1], [], []>} : vector<64x256xbf16>, vector<256x128xbf16>, vector<64x128xf32> -> vector<64x128xf32>
    %c0_3 = arith.constant 0 : index
    %c0_4 = arith.constant 0 : index
    %3 = vector.load %arg3[%c0_3, %c0_4] : memref<1x128xf32, #tpu.memory_space<vmem>>, vector<1x128xf32>
    %4 = vector.broadcast %3 : vector<1x128xf32> to vector<64x128xf32>
    %5 = arith.addf %2, %4 : vector<64x128xf32>
    %cst_5 = arith.constant 0.000000e+00 : f32
    %6 = vector.broadcast %cst_5 : f32 to vector<64x128xf32>
    %7 = arith.maximumf %5, %6 : vector<64x128xf32>
    %8 = arith.truncf %7 : vector<64x128xf32> to vector<64x128xbf16>
    %c0_6 = arith.constant 0 : index
    %c0_7 = arith.constant 0 : index
    %9 = vector.load %arg4[%c0_6, %c0_7] : memref<64x128xbf16, #tpu.memory_space<vmem>>, vector<64x128xbf16>
    tpu.vector_store %arg4[%c0_6, %c0_7], %8 {strides = array<i32>} : memref<64x128xbf16, #tpu.memory_space<vmem>>, vector<64x128xbf16>,
    return
  }
  func.func @transform_0(%arg0: i32) -> (i32, i32) {
    %c0_i32 = arith.constant 0 : i32
    %c0_i32_0 = arith.constant 0 : i32
    return %arg0, %c0_i32 : i32, i32
  }
  func.func @transform_1(%arg0: i32) -> (i32, i32) {
    %c0_i32 = arith.constant 0 : i32
    %c0_i32_0 = arith.constant 0 : i32
    %c0_i32_1 = arith.constant 0 : i32
    return %c0_i32, %c0_i32_0 : i32, i32
  }
  func.func @transform_2(%arg0: i32) -> (i32, i32) {
    %c0_i32 = arith.constant 0 : i32
    %c0_i32_0 = arith.constant 0 : i32
    %c0_i32_1 = arith.constant 0 : i32
    return %c0_i32, %c0_i32_0 : i32, i32
  }
  func.func @transform_3(%arg0: i32) -> (i32, i32) {
    %c0_i32 = arith.constant 0 : i32
    %c0_i32_0 = arith.constant 0 : i32
    return %arg0, %c0_i32 : i32, i32
  }
}

module attributes {stable_mosaic.version = 11 : i64} {
  func.func @_gemm_bias_relu_kernel(%arg0: i32, %arg1: memref<18x512xbf16, #tpu.memory_space<vmem>>, %arg2: memref<512x128xbf16, #tpu.memory_space<vmem>>, %arg3: memref<1x128xf32, #tpu.memory_space<vmem>>, %arg4: memref<18x128xbf16, #tpu.memory_space<vmem>>) attributes {dimension_semantics = [#tpu.dimension_semantics<parallel>], iteration_bounds = array<i64: 1>, scalar_prefetch = 0 : i64, scratch_operands = 0 : i64, tpu.core_type = #tpu.core_type<tc>, window_params = [{transform_indices = @transform_0, window_bounds = array<i64: 18, 512>}, {pipeline_mode = #tpu.pipeline_mode<synchronous>, transform_indices = @transform_1, window_bounds = array<i64: 512, 128>}, {pipeline_mode = #tpu.pipeline_mode<synchronous>, transform_indices = @transform_2, window_bounds = array<i64: 1, 128>}, {transform_indices = @transform_3, window_bounds = array<i64: 18, 128>}]} {
    %c0 = arith.constant 0 : index
    %c0_0 = arith.constant 0 : index
    %0 = vector.load %arg1[%c0, %c0_0] : memref<18x512xbf16, #tpu.memory_space<vmem>>, vector<18x512xbf16>
    %c0_1 = arith.constant 0 : index
    %c0_2 = arith.constant 0 : index
    %1 = vector.load %arg2[%c0_1, %c0_2] : memref<512x128xbf16, #tpu.memory_space<vmem>>, vector<512x128xbf16>
    %cst = arith.constant dense<0.000000e+00> : vector<18x128xf32>
    %2 = tpu.matmul %0, %1, %cst {dimension_numbers = #tpu.dot_dimension_numbers<[1], [0], [0], [1], [0, 0, 1, 1], [], []>} : vector<18x512xbf16>, vector<512x128xbf16>, vector<18x128xf32> -> vector<18x128xf32>
    %c0_3 = arith.constant 0 : index
    %c0_4 = arith.constant 0 : index
    %3 = vector.load %arg3[%c0_3, %c0_4] : memref<1x128xf32, #tpu.memory_space<vmem>>, vector<1x128xf32>
    %4 = vector.broadcast %3 : vector<1x128xf32> to vector<18x128xf32>
    %5 = arith.addf %2, %4 : vector<18x128xf32>
    %cst_5 = arith.constant 0.000000e+00 : f32
    %6 = vector.broadcast %cst_5 : f32 to vector<18x128xf32>
    %7 = arith.maximumf %5, %6 : vector<18x128xf32>
    %8 = arith.truncf %7 : vector<18x128xf32> to vector<18x128xbf16>
    %c0_6 = arith.constant 0 : index
    %c0_7 = arith.constant 0 : index
    %9 = vector.load %arg4[%c0_6, %c0_7] : memref<18x128xbf16, #tpu.memory_space<vmem>>, vector<18x128xbf16>
    tpu.vector_store %arg4[%c0_6, %c0_7], %8 {strides = array<i32>} : memref<18x128xbf16, #tpu.memory_space<vmem>>, vector<18x128xbf16>,
    return
  }
  func.func @transform_0(%arg0: i32) -> (i32, i32) {
    %c0_i32 = arith.constant 0 : i32
    %c0_i32_0 = arith.constant 0 : i32
    return %arg0, %c0_i32 : i32, i32
  }
  func.func @transform_1(%arg0: i32) -> (i32, i32) {
    %c0_i32 = arith.constant 0 : i32
    %c0_i32_0 = arith.constant 0 : i32
    %c0_i32_1 = arith.constant 0 : i32
    return %c0_i32, %c0_i32_0 : i32, i32
  }
  func.func @transform_2(%arg0: i32) -> (i32, i32) {
    %c0_i32 = arith.constant 0 : i32
    %c0_i32_0 = arith.constant 0 : i32
    %c0_i32_1 = arith.constant 0 : i32
    return %c0_i32, %c0_i32_0 : i32, i32
  }
  func.func @transform_3(%arg0: i32) -> (i32, i32) {
    %c0_i32 = arith.constant 0 : i32
    %c0_i32_0 = arith.constant 0 : i32
    return %arg0, %c0_i32 : i32, i32
  }
}

module attributes {stable_mosaic.version = 11 : i64} {
  func.func @_gemm_bias_relu_kernel(%arg0: i32, %arg1: memref<2x576xbf16, #tpu.memory_space<vmem>>, %arg2: memref<576x128xbf16, #tpu.memory_space<vmem>>, %arg3: memref<1x128xf32, #tpu.memory_space<vmem>>, %arg4: memref<2x128xbf16, #tpu.memory_space<vmem>>) attributes {dimension_semantics = [#tpu.dimension_semantics<parallel>], iteration_bounds = array<i64: 1>, scalar_prefetch = 0 : i64, scratch_operands = 0 : i64, tpu.core_type = #tpu.core_type<tc>, window_params = [{transform_indices = @transform_0, window_bounds = array<i64: 2, 576>}, {pipeline_mode = #tpu.pipeline_mode<synchronous>, transform_indices = @transform_1, window_bounds = array<i64: 576, 128>}, {pipeline_mode = #tpu.pipeline_mode<synchronous>, transform_indices = @transform_2, window_bounds = array<i64: 1, 128>}, {transform_indices = @transform_3, window_bounds = array<i64: 2, 128>}]} {
    %c0 = arith.constant 0 : index
    %c0_0 = arith.constant 0 : index
    %0 = vector.load %arg1[%c0, %c0_0] : memref<2x576xbf16, #tpu.memory_space<vmem>>, vector<2x576xbf16>
    %c0_1 = arith.constant 0 : index
    %c0_2 = arith.constant 0 : index
    %1 = vector.load %arg2[%c0_1, %c0_2] : memref<576x128xbf16, #tpu.memory_space<vmem>>, vector<576x128xbf16>
    %cst = arith.constant dense<0.000000e+00> : vector<2x128xf32>
    %2 = tpu.matmul %0, %1, %cst {dimension_numbers = #tpu.dot_dimension_numbers<[1], [0], [0], [1], [0, 0, 1, 1], [], []>} : vector<2x576xbf16>, vector<576x128xbf16>, vector<2x128xf32> -> vector<2x128xf32>
    %c0_3 = arith.constant 0 : index
    %c0_4 = arith.constant 0 : index
    %3 = vector.load %arg3[%c0_3, %c0_4] : memref<1x128xf32, #tpu.memory_space<vmem>>, vector<1x128xf32>
    %4 = vector.broadcast %3 : vector<1x128xf32> to vector<2x128xf32>
    %5 = arith.addf %2, %4 : vector<2x128xf32>
    %cst_5 = arith.constant 0.000000e+00 : f32
    %6 = vector.broadcast %cst_5 : f32 to vector<2x128xf32>
    %7 = arith.maximumf %5, %6 : vector<2x128xf32>
    %8 = arith.truncf %7 : vector<2x128xf32> to vector<2x128xbf16>
    %c0_6 = arith.constant 0 : index
    %c0_7 = arith.constant 0 : index
    %9 = vector.load %arg4[%c0_6, %c0_7] : memref<2x128xbf16, #tpu.memory_space<vmem>>, vector<2x128xbf16>
    tpu.vector_store %arg4[%c0_6, %c0_7], %8 {strides = array<i32>} : memref<2x128xbf16, #tpu.memory_space<vmem>>, vector<2x128xbf16>,
    return
  }
  func.func @transform_0(%arg0: i32) -> (i32, i32) {
    %c0_i32 = arith.constant 0 : i32
    %c0_i32_0 = arith.constant 0 : i32
    return %arg0, %c0_i32 : i32, i32
  }
  func.func @transform_1(%arg0: i32) -> (i32, i32) {
    %c0_i32 = arith.constant 0 : i32
    %c0_i32_0 = arith.constant 0 : i32
    %c0_i32_1 = arith.constant 0 : i32
    return %c0_i32, %c0_i32_0 : i32, i32
  }
  func.func @transform_2(%arg0: i32) -> (i32, i32) {
    %c0_i32 = arith.constant 0 : i32
    %c0_i32_0 = arith.constant 0 : i32
    %c0_i32_1 = arith.constant 0 : i32
    return %c0_i32, %c0_i32_0 : i32, i32
  }
  func.func @transform_3(%arg0: i32) -> (i32, i32) {
    %c0_i32 = arith.constant 0 : i32
    %c0_i32_0 = arith.constant 0 : i32
    return %arg0, %c0_i32 : i32, i32
  }
}

module attributes {stable_mosaic.version = 11 : i64} {
  func.func @_fc_head_kernel(%arg0: i32, %arg1: memref<2x64xbf16, #tpu.memory_space<vmem>>, %arg2: memref<64x512xbf16, #tpu.memory_space<vmem>>, %arg3: memref<1x512xf32, #tpu.memory_space<vmem>>, %arg4: memref<512x128xbf16, #tpu.memory_space<vmem>>, %arg5: memref<1x128xf32, #tpu.memory_space<vmem>>, %arg6: memref<2x128xf32, #tpu.memory_space<vmem>>) attributes {dimension_semantics = [#tpu.dimension_semantics<parallel>], iteration_bounds = array<i64: 1>, scalar_prefetch = 0 : i64, scratch_operands = 0 : i64, tpu.core_type = #tpu.core_type<tc>, window_params = [{transform_indices = @transform_0, window_bounds = array<i64: 2, 64>}, {pipeline_mode = #tpu.pipeline_mode<synchronous>, transform_indices = @transform_1, window_bounds = array<i64: 64, 512>}, {pipeline_mode = #tpu.pipeline_mode<synchronous>, transform_indices = @transform_2, window_bounds = array<i64: 1, 512>}, {pipeline_mode = #tpu.pipeline_mode<synchronous>, transform_indices = @transform_3, window_bounds = array<i64: 512, 128>}, {pipeline_mode = #tpu.pipeline_mode<synchronous>, transform_indices = @transform_4, window_bounds = array<i64: 1, 128>}, {transform_indices = @transform_5, window_bounds = array<i64: 2, 128>}]} {
    %c0 = arith.constant 0 : index
    %c0_0 = arith.constant 0 : index
    %0 = vector.load %arg1[%c0, %c0_0] : memref<2x64xbf16, #tpu.memory_space<vmem>>, vector<2x64xbf16>
    %c0_1 = arith.constant 0 : index
    %c0_2 = arith.constant 0 : index
    %1 = vector.load %arg2[%c0_1, %c0_2] : memref<64x512xbf16, #tpu.memory_space<vmem>>, vector<64x512xbf16>
    %cst = arith.constant dense<0.000000e+00> : vector<2x512xf32>
    %2 = tpu.matmul %0, %1, %cst {dimension_numbers = #tpu.dot_dimension_numbers<[1], [0], [0], [1], [0, 0, 1, 1], [], []>} : vector<2x64xbf16>, vector<64x512xbf16>, vector<2x512xf32> -> vector<2x512xf32>
    %c0_3 = arith.constant 0 : index
    %c0_4 = arith.constant 0 : index
    %3 = vector.load %arg3[%c0_3, %c0_4] : memref<1x512xf32, #tpu.memory_space<vmem>>, vector<1x512xf32>
    %4 = vector.broadcast %3 : vector<1x512xf32> to vector<2x512xf32>
    %5 = arith.addf %2, %4 : vector<2x512xf32>
    %cst_5 = arith.constant 0.000000e+00 : f32
    %6 = vector.broadcast %cst_5 : f32 to vector<2x512xf32>
    %7 = arith.maximumf %5, %6 : vector<2x512xf32>
    %8 = arith.truncf %7 : vector<2x512xf32> to vector<2x512xbf16>
    %c0_6 = arith.constant 0 : index
    %c0_7 = arith.constant 0 : index
    %9 = vector.load %arg4[%c0_6, %c0_7] : memref<512x128xbf16, #tpu.memory_space<vmem>>, vector<512x128xbf16>
    %cst_8 = arith.constant dense<0.000000e+00> : vector<2x128xf32>
    %10 = tpu.matmul %8, %9, %cst_8 {dimension_numbers = #tpu.dot_dimension_numbers<[1], [0], [0], [1], [0, 0, 1, 1], [], []>} : vector<2x512xbf16>, vector<512x128xbf16>, vector<2x128xf32> -> vector<2x128xf32>
    %c0_9 = arith.constant 0 : index
    %c0_10 = arith.constant 0 : index
    %11 = vector.load %arg5[%c0_9, %c0_10] : memref<1x128xf32, #tpu.memory_space<vmem>>, vector<1x128xf32>
    %12 = vector.broadcast %11 : vector<1x128xf32> to vector<2x128xf32>
    %13 = arith.addf %10, %12 : vector<2x128xf32>
    %c0_11 = arith.constant 0 : index
    %c0_12 = arith.constant 0 : index
    %14 = vector.load %arg6[%c0_11, %c0_12] : memref<2x128xf32, #tpu.memory_space<vmem>>, vector<2x128xf32>
    tpu.vector_store %arg6[%c0_11, %c0_12], %13 {strides = array<i32>} : memref<2x128xf32, #tpu.memory_space<vmem>>, vector<2x128xf32>,
    return
  }
  func.func @transform_0(%arg0: i32) -> (i32, i32) {
    %c0_i32 = arith.constant 0 : i32
    %c0_i32_0 = arith.constant 0 : i32
    return %arg0, %c0_i32 : i32, i32
  }
  func.func @transform_1(%arg0: i32) -> (i32, i32) {
    %c0_i32 = arith.constant 0 : i32
    %c0_i32_0 = arith.constant 0 : i32
    %c0_i32_1 = arith.constant 0 : i32
    return %c0_i32, %c0_i32_0 : i32, i32
  }
  func.func @transform_2(%arg0: i32) -> (i32, i32) {
    %c0_i32 = arith.constant 0 : i32
    %c0_i32_0 = arith.constant 0 : i32
    %c0_i32_1 = arith.constant 0 : i32
    return %c0_i32, %c0_i32_0 : i32, i32
  }
  func.func @transform_3(%arg0: i32) -> (i32, i32) {
    %c0_i32 = arith.constant 0 : i32
    %c0_i32_0 = arith.constant 0 : i32
    %c0_i32_1 = arith.constant 0 : i32
    return %c0_i32, %c0_i32_0 : i32, i32
  }
  func.func @transform_4(%arg0: i32) -> (i32, i32) {
    %c0_i32 = arith.constant 0 : i32
    %c0_i32_0 = arith.constant 0 : i32
    %c0_i32_1 = arith.constant 0 : i32
    return %c0_i32, %c0_i32_0 : i32, i32
  }
  func.func @transform_5(%arg0: i32) -> (i32, i32) {
    %c0_i32 = arith.constant 0 : i32
    %c0_i32_0 = arith.constant 0 : i32
    return %arg0, %c0_i32 : i32, i32
  }
}

</mosaic_0001>

<llo_original>
// kernel: dqn_forward.4
$region0: #{dqn_forward.4}
  #allocation0 [shape = 'u32[]', space=smem, size = 0x4, offset = 0x4, fixed_abs, tag = 'smem constant byte address 0x4 - core index']
  #allocation1 [shape = 'u32[144,128]{1,0:T(1,128)}', space=vmem, size = 0x12000, scoped, tag = 'internal scratch']
  %s0 = inlined_call_operand.vmem [shape: bf16[128,256], index: 0, kind: input, shape index: {}]
  %s1 = inlined_call_operand.vmem [shape: bf16[256,128], index: 1, kind: input, shape index: {}]
  %s2 = inlined_call_operand.vmem [shape: f32[1,128], index: 2, kind: input, shape index: {}]
  %s3 = inlined_call_operand.vmem [shape: bf16[128,128], index: 3, kind: output, shape index: {}]
  %s4 = sld [smem:[#allocation0]]
  $region45: #{dqn_forward.4} parent=0
    _
  %s6 = ssub.s32 1, %s4
  %s7 = scalar_select 0, %s6, %s4
  loop: start=0, step=1, limit=4
  $region2: #{dqn_forward.4} parent=0 // loop_pre_header
    _
  $region3: #{dqn_forward.4} parent=0 // loop_header
    %s9 = sphi 0, %s13
    %p10 = scmp.ge.s32.totalorder %s9, 4
    %s19 = sphi 0, %s21
    %s22 = sphi 0, %s19
    %s23 = sphi 0, %s22
    %s39 = sphi 0, %s23
    %s43 = sphi 0, %s43
    %s45 = sphi 0, %s43
    %s46 = sphi 0, %s45
    %s60 = sphi 0, %s46
    %s64 = sphi 0, %s64
    %s66 = sphi 0, %s64
    %s67 = sphi 0, %s66
    %s81 = sphi 0, %s67
    %s87 = sphi 0, %s89
    %s90 = sphi 0, %s87
    %s91 = sphi 0, %s90
    %s107 = sphi 0, %s91
  $region4: #{dqn_forward.4} parent=0 // loop_header_branch
    %12 = sbr.rel (%p10) target = $region8
  $region5: #{dqn_forward.4} parent=0 // loop_body
    %s14 = ssub.s32 %s9, 1
    %s15 = ssub.s32 %s9, 2
    %s16 = sadd.s32 %s9, 1
    %s17 = ssub.s32 %s9, %s16
    %p18 = scmp.eq.s32.totalorder %s17, 0
    %s20 = sadd.s32 %s19, 1
    %s21 = scalar_select %p18, %s19, %s20
    %p24 = pneg %p18
    %p25 = scmp.eq.s32.totalorder %s9, 1
    %p26 = por %p24, %p25
    %p27 = scmp.ne.s32.totalorder %s19, %s22
    %p28 = scmp.eq.s32.totalorder %s9, 0
    %p29 = por %p27, %p28
    %p30 = scmp.ne.s32.totalorder %s19, %s22
    %p31 = scmp.eq.s32.totalorder %s14, 1
    %p32 = por %p30, %p31
    %p33 = scmp.ne.s32.totalorder %s22, %s23
    %p34 = scmp.eq.s32.totalorder %s14, 0
    %p35 = por %p33, %p34
    %p36 = scmp.ne.s32.totalorder %s22, %s23
    %p37 = scmp.eq.s32.totalorder %s15, 1
    %p38 = por %p36, %p37
    %p40 = scmp.ne.s32.totalorder %s23, %s39
    %p41 = scmp.eq.s32.totalorder %s15, 0
    %p42 = por %p40, %p41
    %s44 = sadd.s32 %s43, 1
    %p47 = scmp.eq.s32.totalorder %s9, 1
    %p48 = scmp.ne.s32.totalorder %s43, %s45
    %p49 = scmp.eq.s32.totalorder %s9, 0
    %p50 = por %p48, %p49
    %p51 = scmp.ne.s32.totalorder %s43, %s45
    %p52 = scmp.eq.s32.totalorder %s14, 1
    %p53 = por %p51, %p52
    %p54 = scmp.ne.s32.totalorder %s45, %s46
    %p55 = scmp.eq.s32.totalorder %s14, 0
    %p56 = por %p54, %p55
    %p57 = scmp.ne.s32.totalorder %s45, %s46
    %p58 = scmp.eq.s32.totalorder %s15, 1
    %p59 = por %p57, %p58
    %p61 = scmp.ne.s32.totalorder %s46, %s60
    %p62 = scmp.eq.s32.totalorder %s15, 0
    %p63 = por %p61, %p62
    %s65 = sadd.s32 %s64, 1
    %p68 = scmp.eq.s32.totalorder %s9, 1
    %p69 = scmp.ne.s32.totalorder %s64, %s66
    %p70 = scmp.eq.s32.totalorder %s9, 0
    %p71 = por %p69, %p70
    %p72 = scmp.ne.s32.totalorder %s64, %s66
    %p73 = scmp.eq.s32.totalorder %s14, 1
    %p74 = por %p72, %p73
    %p75 = scmp.ne.s32.totalorder %s66, %s67
    %p76 = scmp.eq.s32.totalorder %s14, 0
    %p77 = por %p75, %p76
    %p78 = scmp.ne.s32.totalorder %s66, %s67
    %p79 = scmp.eq.s32.totalorder %s15, 1
    %p80 = por %p78, %p79
    %p82 = scmp.ne.s32.totalorder %s67, %s81
    %p83 = scmp.eq.s32.totalorder %s15, 0
    %p84 = por %p82, %p83
    %s85 = ssub.s32 %s9, %s16
    %p86 = scmp.eq.s32.totalorder %s85, 0
    %s88 = sadd.s32 %s87, 1
    %s89 = scalar_select %p86, %s87, %s88
    %p92 = pneg %p86
    %p93 = scmp.eq.s32.totalorder %s9, 1
    %p94 = por %p92, %p93
    %p95 = scmp.ne.s32.totalorder %s87, %s90
    %p96 = scmp.eq.s32.totalorder %s9, 0
    %p97 = por %p95, %p96
    %p98 = scmp.ne.s32.totalorder %s87, %s90
    %p99 = scmp.eq.s32.totalorder %s14, 1
    %p100 = por %p98, %p99
    %p101 = scmp.ne.s32.totalorder %s90, %s91
    %p102 = scmp.eq.s32.totalorder %s14, 0
    %p103 = por %p101, %p102
    %p104 = scmp.ne.s32.totalorder %s90, %s91
    %p105 = scmp.eq.s32.totalorder %s15, 1
    %p106 = por %p104, %p105
    %p108 = scmp.ne.s32.totalorder %s91, %s107
    %p109 = scmp.eq.s32.totalorder %s15, 0
    %p110 = por %p108, %p109
    %p111 = scmp.le.s32.totalorder 1, %s9
    %p112 = scmp.lt.s32.totalorder %s9, 3
    %p113 = pnand %p111, %p112
    %p114 = pneg %p113
    // Predicated region
    $region9: #{dqn_forward.4} parent=5 // pred_check
      _
    $region10: #{dqn_forward.4} parent=5 // pred_check_branch
      %116 = sbr.rel (%p113) target = $region12
    $region11: #{dqn_forward.4} parent=5 // pred_region
      %s117 = ssub.s32 %s9, 1
      // Predicated region
      $region13: #{dqn_forward.4} parent=11 // pred_check
        %p118 = pneg %p56
      $region14: #{dqn_forward.4} parent=11 // pred_check_branch
        %120 = sbr.rel (%p118) target = $region16
      $region15: #{dqn_forward.4} parent=11 // pred_region
        _
      $region16: #{dqn_forward.4} parent=11 // pred_fallthru
        _
      // Predicated region
      $region17: #{dqn_forward.4} parent=11 // pred_check
        %p121 = pneg %p77
      $region18: #{dqn_forward.4} parent=11 // pred_check_branch
        %123 = sbr.rel (%p121) target = $region20
      $region19: #{dqn_forward.4} parent=11 // pred_region
        _
      $region20: #{dqn_forward.4} parent=11 // pred_fallthru
        _
    $region12: #{dqn_forward.4} parent=5 // pred_fallthru
      _
    %p124 = scmp.lt.s32.totalorder %s9, 2
    // Predicated region
    $region21: #{dqn_forward.4} parent=5 // pred_check
      %p125 = pneg %p124
    $region22: #{dqn_forward.4} parent=5 // pred_check_branch
      %127 = sbr.rel (%p125) target = $region24
    $region23: #{dqn_forward.4} parent=5 // pred_region
      // Predicated region
      $region25: #{dqn_forward.4} parent=23 // pred_check
        %p128 = pneg %p29
      $region26: #{dqn_forward.4} parent=23 // pred_check_branch
        %130 = sbr.rel (%p128) target = $region28
      $region27: #{dqn_forward.4} parent=23 // pred_region
        %s131 = smul.u32 8, %s9
        %p132 = scmp.lt.s32.totalorder %s131, 15
        %s133 = scalar_select %p132, %s131, 15
        %s134 = smul.addr %s133, 2
        %s135 = smul.addr %s134, 4
        %s136 = scalar_lea.vmem %s0, %s135
        %s137 = smul.u32 8, %s9
      $region28: #{dqn_forward.4} parent=23 // pred_fallthru
        _
    $region24: #{dqn_forward.4} parent=5 // pred_fallthru
      _
    %p138 = scmp.le.s32.totalorder 1, %s9
    %p139 = scmp.lt.s32.totalorder %s9, 3
    %p140 = pnand %p138, %p139
    %p141 = pneg %p140
    // Predicated region
    $region29: #{dqn_forward.4} parent=5 // pred_check
      _
    $region30: #{dqn_forward.4} parent=5 // pred_check_branch
      %143 = sbr.rel (%p140) target = $region32
    $region31: #{dqn_forward.4} parent=5 // pred_region
      %s144 = ssub.s32 %s9, 1
      %s145 = smul.u32 8, %s14
      %p146 = scmp.lt.s32.totalorder %s145, 15
      %s147 = scalar_select %p146, %s145, 15
      %s148 = smul.addr %s147, 2
      %s149 = smul.addr %s148, 4
      %s150 = scalar_lea.vmem %s0, %s149
      %p151 = pneg %p35
      %p152 = pneg %p32
      %p153 = pneg %p56
      %p154 = pneg %p53
      %p155 = pneg %p77
      %p156 = pneg %p74
      %p157 = pneg %p103
      %p158 = pneg %p100
      %s159 = smul.u32 8, %s14
      %p160 = scmp.lt.s32.totalorder %s159, 15
      %s161 = scalar_select %p160, %s159, 15
      %s162 = smul.addr %s161, 4
      %s163 = scalar_lea.vmem %s3, %s162
      %s164 = smul.u32 8, %s14
      %p165 = scmp.lt.s32.totalorder %s164, 15
      %s166 = scalar_select %p165, %s164, 15
      %s167 = smul.addr %s166, 2
      %s168 = smul.addr %s167, 4
      %s169 = scalar_lea.vmem %s0, %s168
      %s170 = smul.u32 8, %s14
      %s171 = smul.u32 8, %s14
      %p172 = scmp.lt.s32.totalorder %s171, 15
      %s173 = scalar_select %p172, %s171, 15
      %s174 = smul.addr %s173, 4
      %s175 = scalar_lea.vmem %s3, %s174
      %s176 = smul.u32 8, %s14
      %v178 = vld [vmem:[%s169] sm:$0xff]
      %v179 = vld [vmem:[%s169 + $0x8] sm:$0xff]
      %v180 = vld [vmem:[%s169 + $0x10] sm:$0xff]
      %v181 = vld [vmem:[%s169 + $0x18] sm:$0xff]
      %v182 = vld [vmem:[%s169 + $0x20] sm:$0xff]
      %v183 = vld [vmem:[%s169 + $0x28] sm:$0xff]
      %v184 = vld [vmem:[%s169 + $0x30] sm:$0xff]
      %v185 = vld [vmem:[%s169 + $0x38] sm:$0xff]
      %v186 = vld [vmem:[%s1] sm:$0xf]
      %v187 = vld [vmem:[%s1 + $0x4] sm:$0xf]
      %v188 = vld [vmem:[%s1 + $0x8] sm:$0xf]
      %v189 = vld [vmem:[%s1 + $0xc] sm:$0xf]
      %v190 = vld [vmem:[%s1 + $0x10] sm:$0xf]
      %v191 = vld [vmem:[%s1 + $0x14] sm:$0xf]
      %v192 = vld [vmem:[%s1 + $0x18] sm:$0xf]
      %v193 = vld [vmem:[%s1 + $0x1c] sm:$0xf]
      %v194 = vld [vmem:[%s1 + $0x20] sm:$0xf]
      %v195 = vld [vmem:[%s1 + $0x24] sm:$0xf]
      %v196 = vld [vmem:[%s1 + $0x28] sm:$0xf]
      %v197 = vld [vmem:[%s1 + $0x2c] sm:$0xf]
      %v198 = vld [vmem:[%s1 + $0x30] sm:$0xf]
      %v199 = vld [vmem:[%s1 + $0x34] sm:$0xf]
      %v200 = vld [vmem:[%s1 + $0x38] sm:$0xf]
      %v201 = vld [vmem:[%s1 + $0x3c] sm:$0xf]
      %v202 = vld [vmem:[%s1 + $0x40] sm:$0xf]
      %v203 = vld [vmem:[%s1 + $0x44] sm:$0xf]
      %v204 = vld [vmem:[%s1 + $0x48] sm:$0xf]
      %v205 = vld [vmem:[%s1 + $0x4c] sm:$0xf]
      %v206 = vld [vmem:[%s1 + $0x50] sm:$0xf]
      %v207 = vld [vmem:[%s1 + $0x54] sm:$0xf]
      %v208 = vld [vmem:[%s1 + $0x58] sm:$0xf]
      %v209 = vld [vmem:[%s1 + $0x5c] sm:$0xf]
      %v210 = vld [vmem:[%s1 + $0x60] sm:$0xf]
      %v211 = vld [vmem:[%s1 + $0x64] sm:$0xf]
      %v212 = vld [vmem:[%s1 + $0x68] sm:$0xf]
      %v213 = vld [vmem:[%s1 + $0x6c] sm:$0xf]
      %v214 = vld [vmem:[%s1 + $0x70] sm:$0xf]
      %v215 = vld [vmem:[%s1 + $0x74] sm:$0xf]
      %v216 = vld [vmem:[%s1 + $0x78] sm:$0xf]
      %v217 = vld [vmem:[%s1 + $0x7c] sm:$0xf]
      %v218 = vld [vmem:[%s2] sm:$0x1]
      %v220 = vlaneseq
      %v221 = vshrl.u32 %v220, 7
      %v222 = vsub.s32 0, %v221
      %v223 = vrot.slane %v218, %v222
      %v233 = vunpack.c.l.b16 %v178
      %v234 = vunpack.c.h.b16 %v178
      %v235 = vunpack.c.l.b16 %v179
      %v236 = vunpack.c.h.b16 %v179
      %v237 = vunpack.c.l.b16 %v180
      %v238 = vunpack.c.h.b16 %v180
      %v239 = vunpack.c.l.b16 %v181
      %v240 = vunpack.c.h.b16 %v181
      %v241 = vunpack.c.l.b16 %v182
      %v242 = vunpack.c.h.b16 %v182
      %v243 = vunpack.c.l.b16 %v183
      %v244 = vunpack.c.h.b16 %v183
      %v245 = vunpack.c.l.b16 %v184
      %v246 = vunpack.c.h.b16 %v184
      %v247 = vunpack.c.l.b16 %v185
      %v248 = vunpack.c.h.b16 %v185
      %v249 = vpack.c.b16 %v235, %v233
      %v250 = vpack.c.b16 %v236, %v234
      %v251 = vpack.c.b16 %v239, %v237
      %v252 = vpack.c.b16 %v240, %v238
      %v253 = vpack.c.b16 %v243, %v241
      %v254 = vpack.c.b16 %v244, %v242
      %v255 = vpack.c.b16 %v247, %v245
      %v256 = vpack.c.b16 %v248, %v246
      %v297 = vunpack.c.l.b16 %v186
      %v298 = vunpack.c.l.b16 %v187
      %v299 = vunpack.c.l.b16 %v188
      %v300 = vunpack.c.l.b16 %v189
      %v301 = vunpack.c.l.b16 %v190
      %v302 = vunpack.c.l.b16 %v191
      %v303 = vunpack.c.l.b16 %v192
      %v304 = vunpack.c.l.b16 %v193
      %v305 = vunpack.c.l.b16 %v194
      %v306 = vunpack.c.l.b16 %v195
      %v307 = vunpack.c.l.b16 %v196
      %v308 = vunpack.c.l.b16 %v197
      %v309 = vunpack.c.l.b16 %v198
      %v310 = vunpack.c.l.b16 %v199
      %v311 = vunpack.c.l.b16 %v200
      %v312 = vunpack.c.l.b16 %v201
      %v313 = vunpack.c.l.b16 %v202
      %v314 = vunpack.c.l.b16 %v203
      %v315 = vunpack.c.l.b16 %v204
      %v316 = vunpack.c.l.b16 %v205
      %v317 = vunpack.c.l.b16 %v206
      %v318 = vunpack.c.l.b16 %v207
      %v319 = vunpack.c.l.b16 %v208
      %v320 = vunpack.c.l.b16 %v209
      %v321 = vunpack.c.l.b16 %v210
      %v322 = vunpack.c.l.b16 %v211
      %v323 = vunpack.c.l.b16 %v212
      %v324 = vunpack.c.l.b16 %v213
      %v325 = vunpack.c.l.b16 %v214
      %v326 = vunpack.c.l.b16 %v215
      %v327 = vunpack.c.l.b16 %v216
      %v328 = vunpack.c.l.b16 %v217
      %v329 = vpack.c.b16 %v298, %v297
      %v330 = vpack.c.b16 %v300, %v299
      %v331 = vpack.c.b16 %v302, %v301
      %v332 = vpack.c.b16 %v304, %v303
      %v333 = vpack.c.b16 %v306, %v305
      %v334 = vpack.c.b16 %v308, %v307
      %v335 = vpack.c.b16 %v310, %v309
      %v336 = vpack.c.b16 %v312, %v311
      %v337 = vpack.c.b16 %v314, %v313
      %v338 = vpack.c.b16 %v316, %v315
      %v339 = vpack.c.b16 %v318, %v317
      %v340 = vpack.c.b16 %v320, %v319
      %v341 = vpack.c.b16 %v322, %v321
      %v342 = vpack.c.b16 %v324, %v323
      %v343 = vpack.c.b16 %v326, %v325
      %v344 = vpack.c.b16 %v328, %v327
      %361 = vmatprep.subr.bf16.mxu0 0
      %362 = vmatpush1.bf16.msra.mxu0 %v336
      %363 = vmatprep.subr.bf16.mxu0 0
      %364 = vmatpush1.bf16.msra.mxu0 %v335
      %365 = vmatprep.subr.bf16.mxu0 0
      %366 = vmatpush1.bf16.msra.mxu0 %v334
      %367 = vmatprep.subr.bf16.mxu0 0
      %368 = vmatpush1.bf16.msra.mxu0 %v333
      %369 = vmatprep.subr.bf16.mxu0 0
      %370 = vmatpush1.bf16.msra.mxu0 %v332
      %371 = vmatprep.subr.bf16.mxu0 0
      %372 = vmatpush1.bf16.msra.mxu0 %v331
      %373 = vmatprep.subr.bf16.mxu0 0
      %374 = vmatpush1.bf16.msra.mxu0 %v330
      %375 = vmatprep.subr.bf16.mxu0 0
      %376 = vmatpush1.bf16.msra.mxu0 %v329
      %377 = vmatprep.subr.bf16.mxu0 0
      %378 = vmatpush2.bf16.msra.mxu0 %v344
      %379 = vmatprep.subr.bf16.mxu0 0
      %380 = vmatpush2.bf16.msra.mxu0 %v343
      %381 = vmatprep.subr.bf16.mxu0 0
      %382 = vmatpush2.bf16.msra.mxu0 %v342
      %383 = vmatprep.subr.bf16.mxu0 0
      %384 = vmatpush2.bf16.msra.mxu0 %v341
      %385 = vmatprep.subr.bf16.mxu0 0
      %386 = vmatpush2.bf16.msra.mxu0 %v340
      %387 = vmatprep.subr.bf16.mxu0 0
      %388 = vmatpush2.bf16.msra.mxu0 %v339
      %389 = vmatprep.subr.bf16.mxu0 0
      %390 = vmatpush2.bf16.msra.mxu0 %v338
      %391 = vmatprep.subr.bf16.mxu0 0
      %392 = vmatpush2.bf16.msra.mxu0 %v337
      %393 = vmatprep.mubr.bf16.mxu0 %v250
      %394 = vmatmul.mubr.bf16.gmra.mxu0 %v249
      %v395 = vpop.f32.mrf.mxu0
      %v396 = vadd.f32 %v223, %v395
      %v397 = vpop.f32.mrf.mxu0
      %v398 = vpop.f32.mrf.mxu0
      %v399 = vadd.f32 %v223, %v398
      %v400 = vpop.f32.mrf.mxu0
      %401 = vmatprep.mubr.bf16.mxu0 %v252
      %402 = vmatmul.mubr.bf16.gmra.mxu0 %v251
      %v403 = vpop.f32.mrf.mxu0
      %v404 = vadd.f32 %v223, %v403
      %v405 = vpop.f32.mrf.mxu0
      %v406 = vpop.f32.mrf.mxu0
      %v407 = vadd.f32 %v223, %v406
      %v408 = vpop.f32.mrf.mxu0
      %409 = vmatprep.mubr.bf16.mxu0 %v254
      %410 = vmatmul.mubr.bf16.gmra.mxu0 %v253
      %v411 = vpop.f32.mrf.mxu0
      %v412 = vadd.f32 %v223, %v411
      %v413 = vpop.f32.mrf.mxu0
      %v414 = vpop.f32.mrf.mxu0
      %v415 = vadd.f32 %v223, %v414
      %v416 = vpop.f32.mrf.mxu0
      %417 = vmatprep.mubr.bf16.mxu0 %v256
      %418 = vmatmul.mubr.bf16.gmra.mxu0 %v255
      %v419 = vpop.f32.mrf.mxu0
      %v420 = vadd.f32 %v223, %v419
      %v421 = vpop.f32.mrf.mxu0
      %v422 = vpop.f32.mrf.mxu0
      %v423 = vadd.f32 %v223, %v422
      %v424 = vpop.f32.mrf.mxu0
      %425 = vdwg.mxu0
      %v426 = vmax.f32 %v396, 0.0
      %v427 = vmax.f32 %v399, 0.0
      %v428 = vmax.f32 %v404, 0.0
      %v429 = vmax.f32 %v407, 0.0
      %v430 = vmax.f32 %v412, 0.0
      %v431 = vmax.f32 %v415, 0.0
      %v432 = vmax.f32 %v420, 0.0
      %v433 = vmax.f32 %v423, 0.0
      %v434 = vpack.c.bf16 %v427, %v426
      %v435 = vpack.c.bf16 %v429, %v428
      %v436 = vpack.c.bf16 %v431, %v430
      %v437 = vpack.c.bf16 %v433, %v432
      %v442 = vunpack.c.l.b16 %v434
      %v443 = vunpack.c.h.b16 %v434
      %v444 = vunpack.c.l.b16 %v435
      %v445 = vunpack.c.h.b16 %v435
      %v446 = vunpack.c.l.b16 %v436
      %v447 = vunpack.c.h.b16 %v436
      %v448 = vunpack.c.l.b16 %v437
      %v449 = vunpack.c.h.b16 %v437
      %v450 = vpack.c.b16 %v442, %v442
      %v451 = vpack.c.b16 %v443, %v443
      %v452 = vpack.c.b16 %v444, %v444
      %v453 = vpack.c.b16 %v445, %v445
      %v454 = vpack.c.b16 %v446, %v446
      %v455 = vpack.c.b16 %v447, %v447
      %v456 = vpack.c.b16 %v448, %v448
      %v457 = vpack.c.b16 %v449, %v449
      %466 = vst [vmem:[%s175] sm:$0xf] %v450
      %467 = vst [vmem:[%s175 + $0x4] sm:$0xf] %v451
      %468 = vst [vmem:[%s175 + $0x8] sm:$0xf] %v452
      %469 = vst [vmem:[%s175 + $0xc] sm:$0xf] %v453
      %470 = vst [vmem:[%s175 + $0x10] sm:$0xf] %v454
      %471 = vst [vmem:[%s175 + $0x14] sm:$0xf] %v455
      %472 = vst [vmem:[%s175 + $0x18] sm:$0xf] %v456
      %473 = vst [vmem:[%s175 + $0x1c] sm:$0xf] %v457
      %s474 = smul.u32 8, %s14
      %p475 = scmp.lt.s32.totalorder %s474, 15
      %s476 = scalar_select %p475, %s474, 15
      %s477 = smul.addr %s476, 4
      %s478 = scalar_lea.vmem %s3, %s477
      // Predicated region
      $region33: #{dqn_forward.4} parent=31 // pred_check
        %p479 = pneg %p100
      $region34: #{dqn_forward.4} parent=31 // pred_check_branch
        %481 = sbr.rel (%p479) target = $region36
      $region35: #{dqn_forward.4} parent=31 // pred_region
        %s482 = smul.u32 8, %s14
      $region36: #{dqn_forward.4} parent=31 // pred_fallthru
        _
    $region32: #{dqn_forward.4} parent=5 // pred_fallthru
      _
    %p483 = scmp.le.s32.totalorder 2, %s9
    // Predicated region
    $region37: #{dqn_forward.4} parent=5 // pred_check
      %p484 = pneg %p483
    $region38: #{dqn_forward.4} parent=5 // pred_check_branch
      %486 = sbr.rel (%p484) target = $region40
    $region39: #{dqn_forward.4} parent=5 // pred_region
      %s487 = ssub.s32 %s9, 2
      // Predicated region
      $region41: #{dqn_forward.4} parent=39 // pred_check
        %p488 = pneg %p106
      $region42: #{dqn_forward.4} parent=39 // pred_check_branch
        %490 = sbr.rel (%p488) target = $region44
      $region43: #{dqn_forward.4} parent=39 // pred_region
        %s491 = smul.u32 8, %s15
        %p492 = scmp.lt.s32.totalorder %s491, 15
        %s493 = scalar_select %p492, %s491, 15
        %s494 = smul.addr %s493, 4
        %s495 = scalar_lea.vmem %s3, %s494
      $region44: #{dqn_forward.4} parent=39 // pred_fallthru
        _
    $region40: #{dqn_forward.4} parent=5 // pred_fallthru
      _
  $region6: #{dqn_forward.4} parent=0 // loop_footer
    %s13 = sadd.s32 1, %s9
  $region7: #{dqn_forward.4} parent=0 // loop_footer_branch
    %8 = sbr.rel target = $region3
  $region8: #{dqn_forward.4} parent=0 // loop_exit
    _

// kernel: dqn_forward.5
$region0: #{dqn_forward.5}
  #allocation0 [shape = 'u32[]', space=smem, size = 0x4, offset = 0x4, fixed_abs, tag = 'smem constant byte address 0x4 - core index']
  #allocation1 [shape = 'u32[144,128]{1,0:T(1,128)}', space=vmem, size = 0x12000, scoped, tag = 'internal scratch']
  %s0 = inlined_call_operand.vmem [shape: bf16[18,512], index: 0, kind: input, shape index: {}]
  %s1 = inlined_call_operand.vmem [shape: bf16[512,128], index: 1, kind: input, shape index: {}]
  %s2 = inlined_call_operand.vmem [shape: f32[1,128], index: 2, kind: input, shape index: {}]
  %s3 = inlined_call_operand.vmem [shape: bf16[18,128], index: 3, kind: output, shape index: {}]
  %s4 = sld [smem:[#allocation0]]
  $region22: #{dqn_forward.5} parent=0
    _
  %s6 = ssub.s32 1, %s4
  %s7 = scalar_select 0, %s6, %s4
  // Predicated region
  $region2: #{dqn_forward.5} parent=0 // pred_check
    _
  $region3: #{dqn_forward.5} parent=0 // pred_check_branch
    %9 = sbr.rel (0) target = $region5
  $region4: #{dqn_forward.5} parent=0 // pred_region
    _
  $region5: #{dqn_forward.5} parent=0 // pred_fallthru
    _
  // Predicated region
  $region6: #{dqn_forward.5} parent=0 // pred_check
    _
  $region7: #{dqn_forward.5} parent=0 // pred_check_branch
    %11 = sbr.rel (0) target = $region9
  $region8: #{dqn_forward.5} parent=0 // pred_region
    _
  $region9: #{dqn_forward.5} parent=0 // pred_fallthru
    _
  // Predicated region
  $region10: #{dqn_forward.5} parent=0 // pred_check
    _
  $region11: #{dqn_forward.5} parent=0 // pred_check_branch
    %13 = sbr.rel (0) target = $region13
  $region12: #{dqn_forward.5} parent=0 // pred_region
    _
  $region13: #{dqn_forward.5} parent=0 // pred_fallthru
    _
  %v15 = vld [vmem:[%s0] sm:$0xff]
  %v16 = vld [vmem:[%s0 + $0x8] sm:$0xff]
  %v17 = vld [vmem:[%s0 + $0x10] sm:$0xff]
  %v18 = vld [vmem:[%s0 + $0x18] sm:$0xff]
  %v19 = vld [vmem:[%s0 + $0x20] sm:$0x11]
  %v20 = vld [vmem:[%s0 + $0x28] sm:$0x11]
  %v21 = vld [vmem:[%s1] sm:$0xf]
  %v22 = vld [vmem:[%s1 + $0x4] sm:$0xf]
  %v23 = vld [vmem:[%s1 + $0x8] sm:$0xf]
  %v24 = vld [vmem:[%s1 + $0xc] sm:$0xf]
  %v25 = vld [vmem:[%s1 + $0x10] sm:$0xf]
  %v26 = vld [vmem:[%s1 + $0x14] sm:$0xf]
  %v27 = vld [vmem:[%s1 + $0x18] sm:$0xf]
  %v28 = vld [vmem:[%s1 + $0x1c] sm:$0xf]
  %v29 = vld [vmem:[%s1 + $0x20] sm:$0xf]
  %v30 = vld [vmem:[%s1 + $0x24] sm:$0xf]
  %v31 = vld [vmem:[%s1 + $0x28] sm:$0xf]
  %v32 = vld [vmem:[%s1 + $0x2c] sm:$0xf]
  %v33 = vld [vmem:[%s1 + $0x30] sm:$0xf]
  %v34 = vld [vmem:[%s1 + $0x34] sm:$0xf]
  %v35 = vld [vmem:[%s1 + $0x38] sm:$0xf]
  %v36 = vld [vmem:[%s1 + $0x3c] sm:$0xf]
  %v37 = vld [vmem:[%s1 + $0x40] sm:$0xf]
  %v38 = vld [vmem:[%s1 + $0x44] sm:$0xf]
  %v39 = vld [vmem:[%s1 + $0x48] sm:$0xf]
  %v40 = vld [vmem:[%s1 + $0x4c] sm:$0xf]
  %v41 = vld [vmem:[%s1 + $0x50] sm:$0xf]
  %v42 = vld [vmem:[%s1 + $0x54] sm:$0xf]
  %v43 = vld [vmem:[%s1 + $0x58] sm:$0xf]
  %v44 = vld [vmem:[%s1 + $0x5c] sm:$0xf]
  %v45 = vld [vmem:[%s1 + $0x60] sm:$0xf]
  %v46 = vld [vmem:[%s1 + $0x64] sm:$0xf]
  %v47 = vld [vmem:[%s1 + $0x68] sm:$0xf]
  %v48 = vld [vmem:[%s1 + $0x6c] sm:$0xf]
  %v49 = vld [vmem:[%s1 + $0x70] sm:$0xf]
  %v50 = vld [vmem:[%s1 + $0x74] sm:$0xf]
  %v51 = vld [vmem:[%s1 + $0x78] sm:$0xf]
  %v52 = vld [vmem:[%s1 + $0x7c] sm:$0xf]
  %v53 = vld [vmem:[%s1 + $0x80] sm:$0xf]
  %v54 = vld [vmem:[%s1 + $0x84] sm:$0xf]
  %v55 = vld [vmem:[%s1 + $0x88] sm:$0xf]
  %v56 = vld [vmem:[%s1 + $0x8c] sm:$0xf]
  %v57 = vld [vmem:[%s1 + $0x90] sm:$0xf]
  %v58 = vld [vmem:[%s1 + $0x94] sm:$0xf]
  %v59 = vld [vmem:[%s1 + $0x98] sm:$0xf]
  %v60 = vld [vmem:[%s1 + $0x9c] sm:$0xf]
  %v61 = vld [vmem:[%s1 + $0xa0] sm:$0xf]
  %v62 = vld [vmem:[%s1 + $0xa4] sm:$0xf]
  %v63 = vld [vmem:[%s1 + $0xa8] sm:$0xf]
  %v64 = vld [vmem:[%s1 + $0xac] sm:$0xf]
  %v65 = vld [vmem:[%s1 + $0xb0] sm:$0xf]
  %v66 = vld [vmem:[%s1 + $0xb4] sm:$0xf]
  %v67 = vld [vmem:[%s1 + $0xb8] sm:$0xf]
  %v68 = vld [vmem:[%s1 + $0xbc] sm:$0xf]
  %v69 = vld [vmem:[%s1 + $0xc0] sm:$0xf]
  %v70 = vld [vmem:[%s1 + $0xc4] sm:$0xf]
  %v71 = vld [vmem:[%s1 + $0xc8] sm:$0xf]
  %v72 = vld [vmem:[%s1 + $0xcc] sm:$0xf]
  %v73 = vld [vmem:[%s1 + $0xd0] sm:$0xf]
  %v74 = vld [vmem:[%s1 + $0xd4] sm:$0xf]
  %v75 = vld [vmem:[%s1 + $0xd8] sm:$0xf]
  %v76 = vld [vmem:[%s1 + $0xdc] sm:$0xf]
  %v77 = vld [vmem:[%s1 + $0xe0] sm:$0xf]
  %v78 = vld [vmem:[%s1 + $0xe4] sm:$0xf]
  %v79 = vld [vmem:[%s1 + $0xe8] sm:$0xf]
  %v80 = vld [vmem:[%s1 + $0xec] sm:$0xf]
  %v81 = vld [vmem:[%s1 + $0xf0] sm:$0xf]
  %v82 = vld [vmem:[%s1 + $0xf4] sm:$0xf]
  %v83 = vld [vmem:[%s1 + $0xf8] sm:$0xf]
  %v84 = vld [vmem:[%s1 + $0xfc] sm:$0xf]
  %v85 = vld [vmem:[%s2] sm:$0x1]
  %v87 = vlaneseq
  %v88 = vshrl.u32 %v87, 7
  %v89 = vsub.s32 0, %v88
  %v90 = vrot.slane %v85, %v89
  %v98 = vunpack.c.l.b16 %v15
  %v99 = vunpack.c.h.b16 %v15
  %v100 = vunpack.c.l.b16 %v16
  %v101 = vunpack.c.h.b16 %v16
  %v102 = vunpack.c.l.b16 %v17
  %v103 = vunpack.c.h.b16 %v17
  %v104 = vunpack.c.l.b16 %v18
  %v105 = vunpack.c.h.b16 %v18
  %v106 = vunpack.c.l.b16 %v19
  %v107 = vunpack.c.h.b16 %v19
  %v108 = vunpack.c.l.b16 %v20
  %v109 = vunpack.c.h.b16 %v20
  %v110 = vpack.c.b16 %v102, %v98
  %v111 = vpack.c.b16 %v103, %v99
  %v112 = vpack.c.b16 %v104, %v100
  %v113 = vpack.c.b16 %v105, %v101
  %v114 = vpack.c.b16 %v106, %v106
  %v115 = vpack.c.b16 %v107, %v107
  %v116 = vpack.c.b16 %v108, %v108
  %v117 = vpack.c.b16 %v109, %v109
  %v190 = vunpack.c.l.b16 %v21
  %v191 = vunpack.c.l.b16 %v22
  %v192 = vunpack.c.l.b16 %v23
  %v193 = vunpack.c.l.b16 %v24
  %v194 = vunpack.c.l.b16 %v25
  %v195 = vunpack.c.l.b16 %v26
  %v196 = vunpack.c.l.b16 %v27
  %v197 = vunpack.c.l.b16 %v28
  %v198 = vunpack.c.l.b16 %v29
  %v199 = vunpack.c.l.b16 %v30
  %v200 = vunpack.c.l.b16 %v31
  %v201 = vunpack.c.l.b16 %v32
  %v202 = vunpack.c.l.b16 %v33
  %v203 = vunpack.c.l.b16 %v34
  %v204 = vunpack.c.l.b16 %v35
  %v205 = vunpack.c.l.b16 %v36
  %v206 = vunpack.c.l.b16 %v37
  %v207 = vunpack.c.l.b16 %v38
  %v208 = vunpack.c.l.b16 %v39
  %v209 = vunpack.c.l.b16 %v40
  %v210 = vunpack.c.l.b16 %v41
  %v211 = vunpack.c.l.b16 %v42
  %v212 = vunpack.c.l.b16 %v43
  %v213 = vunpack.c.l.b16 %v44
  %v214 = vunpack.c.l.b16 %v45
  %v215 = vunpack.c.l.b16 %v46
  %v216 = vunpack.c.l.b16 %v47
  %v217 = vunpack.c.l.b16 %v48
  %v218 = vunpack.c.l.b16 %v49
  %v219 = vunpack.c.l.b16 %v50
  %v220 = vunpack.c.l.b16 %v51
  %v221 = vunpack.c.l.b16 %v52
  %v222 = vunpack.c.l.b16 %v53
  %v223 = vunpack.c.l.b16 %v54
  %v224 = vunpack.c.l.b16 %v55
  %v225 = vunpack.c.l.b16 %v56
  %v226 = vunpack.c.l.b16 %v57
  %v227 = vunpack.c.l.b16 %v58
  %v228 = vunpack.c.l.b16 %v59
  %v229 = vunpack.c.l.b16 %v60
  %v230 = vunpack.c.l.b16 %v61
  %v231 = vunpack.c.l.b16 %v62
  %v232 = vunpack.c.l.b16 %v63
  %v233 = vunpack.c.l.b16 %v64
  %v234 = vunpack.c.l.b16 %v65
  %v235 = vunpack.c.l.b16 %v66
  %v236 = vunpack.c.l.b16 %v67
  %v237 = vunpack.c.l.b16 %v68
  %v238 = vunpack.c.l.b16 %v69
  %v239 = vunpack.c.l.b16 %v70
  %v240 = vunpack.c.l.b16 %v71
  %v241 = vunpack.c.l.b16 %v72
  %v242 = vunpack.c.l.b16 %v73
  %v243 = vunpack.c.l.b16 %v74
  %v244 = vunpack.c.l.b16 %v75
  %v245 = vunpack.c.l.b16 %v76
  %v246 = vunpack.c.l.b16 %v77
  %v247 = vunpack.c.l.b16 %v78
  %v248 = vunpack.c.l.b16 %v79
  %v249 = vunpack.c.l.b16 %v80
  %v250 = vunpack.c.l.b16 %v81
  %v251 = vunpack.c.l.b16 %v82
  %v252 = vunpack.c.l.b16 %v83
  %v253 = vunpack.c.l.b16 %v84
  %v254 = vpack.c.b16 %v191, %v190
  %v255 = vpack.c.b16 %v193, %v192
  %v256 = vpack.c.b16 %v195, %v194
  %v257 = vpack.c.b16 %v197, %v196
  %v258 = vpack.c.b16 %v199, %v198
  %v259 = vpack.c.b16 %v201, %v200
  %v260 = vpack.c.b16 %v203, %v202
  %v261 = vpack.c.b16 %v205, %v204
  %v262 = vpack.c.b16 %v207, %v206
  %v263 = vpack.c.b16 %v209, %v208
  %v264 = vpack.c.b16 %v211, %v210
  %v265 = vpack.c.b16 %v213, %v212
  %v266 = vpack.c.b16 %v215, %v214
  %v267 = vpack.c.b16 %v217, %v216
  %v268 = vpack.c.b16 %v219, %v218
  %v269 = vpack.c.b16 %v221, %v220
  %v270 = vpack.c.b16 %v223, %v222
  %v271 = vpack.c.b16 %v225, %v224
  %v272 = vpack.c.b16 %v227, %v226
  %v273 = vpack.c.b16 %v229, %v228
  %v274 = vpack.c.b16 %v231, %v230
  %v275 = vpack.c.b16 %v233, %v232
  %v276 = vpack.c.b16 %v235, %v234
  %v277 = vpack.c.b16 %v237, %v236
  %v278 = vpack.c.b16 %v239, %v238
  %v279 = vpack.c.b16 %v241, %v240
  %v280 = vpack.c.b16 %v243, %v242
  %v281 = vpack.c.b16 %v245, %v244
  %v282 = vpack.c.b16 %v247, %v246
  %v283 = vpack.c.b16 %v249, %v248
  %v284 = vpack.c.b16 %v251, %v250
  %v285 = vpack.c.b16 %v253, %v252
  %318 = vmatprep.subr.bf16.mxu0 0
  %319 = vmatpush1.bf16.msra.mxu0 %v261
  %320 = vmatprep.subr.bf16.mxu0 0
  %321 = vmatpush1.bf16.msra.mxu0 %v260
  %322 = vmatprep.subr.bf16.mxu0 0
  %323 = vmatpush1.bf16.msra.mxu0 %v259
  %324 = vmatprep.subr.bf16.mxu0 0
  %325 = vmatpush1.bf16.msra.mxu0 %v258
  %326 = vmatprep.subr.bf16.mxu0 0
  %327 = vmatpush1.bf16.msra.mxu0 %v257
  %328 = vmatprep.subr.bf16.mxu0 0
  %329 = vmatpush1.bf16.msra.mxu0 %v256
  %330 = vmatprep.subr.bf16.mxu0 0
  %331 = vmatpush1.bf16.msra.mxu0 %v255
  %332 = vmatprep.subr.bf16.mxu0 0
  %333 = vmatpush1.bf16.msra.mxu0 %v254
  %334 = vmatprep.subr.bf16.mxu0 0
  %335 = vmatpush2.bf16.msra.mxu0 %v269
  %336 = vmatprep.subr.bf16.mxu0 0
  %337 = vmatpush2.bf16.msra.mxu0 %v268
  %338 = vmatprep.subr.bf16.mxu0 0
  %339 = vmatpush2.bf16.msra.mxu0 %v267
  %340 = vmatprep.subr.bf16.mxu0 0
  %341 = vmatpush2.bf16.msra.mxu0 %v266
  %342 = vmatprep.subr.bf16.mxu0 0
  %343 = vmatpush2.bf16.msra.mxu0 %v265
  %344 = vmatprep.subr.bf16.mxu0 0
  %345 = vmatpush2.bf16.msra.mxu0 %v264
  %346 = vmatprep.subr.bf16.mxu0 0
  %347 = vmatpush2.bf16.msra.mxu0 %v263
  %348 = vmatprep.subr.bf16.mxu0 0
  %349 = vmatpush2.bf16.msra.mxu0 %v262
  %350 = vmatprep.mubr.bf16.mxu0 %v111
  %351 = vmatmul.mubr.bf16.gmra.mxu0 %v110
  %v352 = vpop.f32.mrf.mxu0
  %v353 = vadd.f32 %v90, %v352
  %v354 = vpop.f32.mrf.mxu0
  %v355 = vpop.f32.mrf.mxu0
  %v356 = vadd.f32 %v90, %v355
  %v357 = vpop.f32.mrf.mxu0
  %358 = vmatprep.mubr.bf16.mxu0 %v115
  %359 = vmatmul.mubr.bf16.gmra.mxu0 %v114
  %v360 = vpop.f32.mrf.mxu0
  %v361 = vadd.f32 %v90, %v360
  %v362 = vpop.f32.mrf.mxu0
  %v363 = vpop.f32.mrf.mxu0
  %v364 = vpop.f32.mrf.mxu0
  %365 = vdwg.mxu0
  %366 = vmatprep.subr.bf16.mxu0 0
  %367 = vmatpush1.bf16.msra.mxu0 %v277
  %368 = vmatprep.subr.bf16.mxu0 0
  %369 = vmatpush1.bf16.msra.mxu0 %v276
  %370 = vmatprep.subr.bf16.mxu0 0
  %371 = vmatpush1.bf16.msra.mxu0 %v275
  %372 = vmatprep.subr.bf16.mxu0 0
  %373 = vmatpush1.bf16.msra.mxu0 %v274
  %374 = vmatprep.subr.bf16.mxu0 0
  %375 = vmatpush1.bf16.msra.mxu0 %v273
  %376 = vmatprep.subr.bf16.mxu0 0
  %377 = vmatpush1.bf16.msra.mxu0 %v272
  %378 = vmatprep.subr.bf16.mxu0 0
  %379 = vmatpush1.bf16.msra.mxu0 %v271
  %380 = vmatprep.subr.bf16.mxu0 0
  %381 = vmatpush1.bf16.msra.mxu0 %v270
  %382 = vmatprep.subr.bf16.mxu0 0
  %383 = vmatpush2.bf16.msra.mxu0 %v285
  %384 = vmatprep.subr.bf16.mxu0 0
  %385 = vmatpush2.bf16.msra.mxu0 %v284
  %386 = vmatprep.subr.bf16.mxu0 0
  %387 = vmatpush2.bf16.msra.mxu0 %v283
  %388 = vmatprep.subr.bf16.mxu0 0
  %389 = vmatpush2.bf16.msra.mxu0 %v282
  %390 = vmatprep.subr.bf16.mxu0 0
  %391 = vmatpush2.bf16.msra.mxu0 %v281
  %392 = vmatprep.subr.bf16.mxu0 0
  %393 = vmatpush2.bf16.msra.mxu0 %v280
  %394 = vmatprep.subr.bf16.mxu0 0
  %395 = vmatpush2.bf16.msra.mxu0 %v279
  %396 = vmatprep.subr.bf16.mxu0 0
  %397 = vmatpush2.bf16.msra.mxu0 %v278
  %398 = vmatprep.mubr.bf16.mxu0 %v113
  %399 = vmatmul.mubr.bf16.gmra.mxu0 %v112
  %v400 = vpop.f32.mrf.mxu0
  %v401 = vadd.f32 %v353, %v400
  %v402 = vpop.f32.mrf.mxu0
  %v403 = vpop.f32.mrf.mxu0
  %v404 = vadd.f32 %v356, %v403
  %v405 = vpop.f32.mrf.mxu0
  %406 = vmatprep.mubr.bf16.mxu0 %v117
  %407 = vmatmul.mubr.bf16.gmra.mxu0 %v116
  %v408 = vpop.f32.mrf.mxu0
  %v409 = vadd.f32 %v361, %v408
  %v410 = vpop.f32.mrf.mxu0
  %v411 = vpop.f32.mrf.mxu0
  %v412 = vpop.f32.mrf.mxu0
  %413 = vdwg.mxu0
  %v414 = vmax.f32 %v401, 0.0
  %v415 = vmax.f32 %v404, 0.0
  %v416 = vmax.f32 %v409, 0.0
  %v417 = vpack.c.bf16 %v415, %v414
  %v418 = vpack.c.bf16 %v416, %v416
  %v421 = vunpack.c.l.b16 %v417
  %v422 = vunpack.c.h.b16 %v417
  %v423 = vunpack.c.l.b16 %v418
  %v424 = vpack.c.b16 %v421, %v421
  %v425 = vpack.c.b16 %v422, %v422
  %v426 = vpack.c.b16 %v423, %v423
  %430 = vst [vmem:[%s3] sm:$0xf] %v424
  %431 = vst [vmem:[%s3 + $0x4] sm:$0xf] %v425
  %432 = vst [vmem:[%s3 + $0x8] sm:$0x1] %v426
  // Predicated region
  $region14: #{dqn_forward.5} parent=0 // pred_check
    _
  $region15: #{dqn_forward.5} parent=0 // pred_check_branch
    %434 = sbr.rel (0) target = $region17
  $region16: #{dqn_forward.5} parent=0 // pred_region
    _
  $region17: #{dqn_forward.5} parent=0 // pred_fallthru
    _
  // Predicated region
  $region18: #{dqn_forward.5} parent=0 // pred_check
    _
  $region19: #{dqn_forward.5} parent=0 // pred_check_branch
    %436 = sbr.rel (0) target = $region21
  $region20: #{dqn_forward.5} parent=0 // pred_region
    _
  $region21: #{dqn_forward.5} parent=0 // pred_fallthru
    _

// kernel: dqn_forward.6
$region0: #{dqn_forward.6}
  #allocation0 [shape = 'u32[]', space=smem, size = 0x4, offset = 0x4, fixed_abs, tag = 'smem constant byte address 0x4 - core index']
  #allocation1 [shape = 'u32[144,128]{1,0:T(1,128)}', space=vmem, size = 0x12000, scoped, tag = 'internal scratch']
  %s0 = inlined_call_operand.vmem [shape: bf16[2,576], index: 0, kind: input, shape index: {}]
  %s1 = inlined_call_operand.vmem [shape: bf16[576,128], index: 1, kind: input, shape index: {}]
  %s2 = inlined_call_operand.vmem [shape: f32[1,128], index: 2, kind: input, shape index: {}]
  %s3 = inlined_call_operand.vmem [shape: bf16[2,128], index: 3, kind: output, shape index: {}]
  %s4 = sld [smem:[#allocation0]]
  $region22: #{dqn_forward.6} parent=0
    _
  %s6 = ssub.s32 1, %s4
  %s7 = scalar_select 0, %s6, %s4
  // Predicated region
  $region2: #{dqn_forward.6} parent=0 // pred_check
    _
  $region3: #{dqn_forward.6} parent=0 // pred_check_branch
    %9 = sbr.rel (0) target = $region5
  $region4: #{dqn_forward.6} parent=0 // pred_region
    _
  $region5: #{dqn_forward.6} parent=0 // pred_fallthru
    _
  // Predicated region
  $region6: #{dqn_forward.6} parent=0 // pred_check
    _
  $region7: #{dqn_forward.6} parent=0 // pred_check_branch
    %11 = sbr.rel (0) target = $region9
  $region8: #{dqn_forward.6} parent=0 // pred_region
    _
  $region9: #{dqn_forward.6} parent=0 // pred_fallthru
    _
  // Predicated region
  $region10: #{dqn_forward.6} parent=0 // pred_check
    _
  $region11: #{dqn_forward.6} parent=0 // pred_check_branch
    %13 = sbr.rel (0) target = $region13
  $region12: #{dqn_forward.6} parent=0 // pred_region
    _
  $region13: #{dqn_forward.6} parent=0 // pred_fallthru
    _
  %v15 = vld [vmem:[%s0] sm:$0x1f]
  %v16 = vld [vmem:[%s1] sm:$0xf]
  %v17 = vld [vmem:[%s1 + $0x4] sm:$0xf]
  %v18 = vld [vmem:[%s1 + $0x8] sm:$0xf]
  %v19 = vld [vmem:[%s1 + $0xc] sm:$0xf]
  %v20 = vld [vmem:[%s1 + $0x10] sm:$0xf]
  %v21 = vld [vmem:[%s1 + $0x14] sm:$0xf]
  %v22 = vld [vmem:[%s1 + $0x18] sm:$0xf]
  %v23 = vld [vmem:[%s1 + $0x1c] sm:$0xf]
  %v24 = vld [vmem:[%s1 + $0x20] sm:$0xf]
  %v25 = vld [vmem:[%s1 + $0x24] sm:$0xf]
  %v26 = vld [vmem:[%s1 + $0x28] sm:$0xf]
  %v27 = vld [vmem:[%s1 + $0x2c] sm:$0xf]
  %v28 = vld [vmem:[%s1 + $0x30] sm:$0xf]
  %v29 = vld [vmem:[%s1 + $0x34] sm:$0xf]
  %v30 = vld [vmem:[%s1 + $0x38] sm:$0xf]
  %v31 = vld [vmem:[%s1 + $0x3c] sm:$0xf]
  %v32 = vld [vmem:[%s1 + $0x40] sm:$0xf]
  %v33 = vld [vmem:[%s1 + $0x44] sm:$0xf]
  %v34 = vld [vmem:[%s1 + $0x48] sm:$0xf]
  %v35 = vld [vmem:[%s1 + $0x4c] sm:$0xf]
  %v36 = vld [vmem:[%s1 + $0x50] sm:$0xf]
  %v37 = vld [vmem:[%s1 + $0x54] sm:$0xf]
  %v38 = vld [vmem:[%s1 + $0x58] sm:$0xf]
  %v39 = vld [vmem:[%s1 + $0x5c] sm:$0xf]
  %v40 = vld [vmem:[%s1 + $0x60] sm:$0xf]
  %v41 = vld [vmem:[%s1 + $0x64] sm:$0xf]
  %v42 = vld [vmem:[%s1 + $0x68] sm:$0xf]
  %v43 = vld [vmem:[%s1 + $0x6c] sm:$0xf]
  %v44 = vld [vmem:[%s1 + $0x70] sm:$0xf]
  %v45 = vld [vmem:[%s1 + $0x74] sm:$0xf]
  %v46 = vld [vmem:[%s1 + $0x78] sm:$0xf]
  %v47 = vld [vmem:[%s1 + $0x7c] sm:$0xf]
  %v48 = vld [vmem:[%s1 + $0x80] sm:$0xf]
  %v49 = vld [vmem:[%s1 + $0x84] sm:$0xf]
  %v50 = vld [vmem:[%s1 + $0x88] sm:$0xf]
  %v51 = vld [vmem:[%s1 + $0x8c] sm:$0xf]
  %v52 = vld [vmem:[%s1 + $0x90] sm:$0xf]
  %v53 = vld [vmem:[%s1 + $0x94] sm:$0xf]
  %v54 = vld [vmem:[%s1 + $0x98] sm:$0xf]
  %v55 = vld [vmem:[%s1 + $0x9c] sm:$0xf]
  %v56 = vld [vmem:[%s1 + $0xa0] sm:$0xf]
  %v57 = vld [vmem:[%s1 + $0xa4] sm:$0xf]
  %v58 = vld [vmem:[%s1 + $0xa8] sm:$0xf]
  %v59 = vld [vmem:[%s1 + $0xac] sm:$0xf]
  %v60 = vld [vmem:[%s1 + $0xb0] sm:$0xf]
  %v61 = vld [vmem:[%s1 + $0xb4] sm:$0xf]
  %v62 = vld [vmem:[%s1 + $0xb8] sm:$0xf]
  %v63 = vld [vmem:[%s1 + $0xbc] sm:$0xf]
  %v64 = vld [vmem:[%s1 + $0xc0] sm:$0xf]
  %v65 = vld [vmem:[%s1 + $0xc4] sm:$0xf]
  %v66 = vld [vmem:[%s1 + $0xc8] sm:$0xf]
  %v67 = vld [vmem:[%s1 + $0xcc] sm:$0xf]
  %v68 = vld [vmem:[%s1 + $0xd0] sm:$0xf]
  %v69 = vld [vmem:[%s1 + $0xd4] sm:$0xf]
  %v70 = vld [vmem:[%s1 + $0xd8] sm:$0xf]
  %v71 = vld [vmem:[%s1 + $0xdc] sm:$0xf]
  %v72 = vld [vmem:[%s1 + $0xe0] sm:$0xf]
  %v73 = vld [vmem:[%s1 + $0xe4] sm:$0xf]
  %v74 = vld [vmem:[%s1 + $0xe8] sm:$0xf]
  %v75 = vld [vmem:[%s1 + $0xec] sm:$0xf]
  %v76 = vld [vmem:[%s1 + $0xf0] sm:$0xf]
  %v77 = vld [vmem:[%s1 + $0xf4] sm:$0xf]
  %v78 = vld [vmem:[%s1 + $0xf8] sm:$0xf]
  %v79 = vld [vmem:[%s1 + $0xfc] sm:$0xf]
  %v80 = vld [vmem:[%s1 + $0x100] sm:$0xf]
  %v81 = vld [vmem:[%s1 + $0x104] sm:$0xf]
  %v82 = vld [vmem:[%s1 + $0x108] sm:$0xf]
  %v83 = vld [vmem:[%s1 + $0x10c] sm:$0xf]
  %v84 = vld [vmem:[%s1 + $0x110] sm:$0xf]
  %v85 = vld [vmem:[%s1 + $0x114] sm:$0xf]
  %v86 = vld [vmem:[%s1 + $0x118] sm:$0xf]
  %v87 = vld [vmem:[%s1 + $0x11c] sm:$0xf]
  %v88 = vld [vmem:[%s2] sm:$0x1]
  %v90 = vlaneseq
  %v91 = vshrl.u32 %v90, 7
  %v92 = vsub.s32 0, %v91
  %v93 = vrot.slane %v88, %v92
  %v96 = vcombine.high %v15, %v15
  %v98 = vunpack.c.l.s4 1966171168
  %v99 = vunpack.c.0.s8 %v98
  %v100 = vlaneseq
  %v101 = vshrl.u32 %v100, 7
  %v102 = vsub.s32 %v99, %v101
  %v103 = vrot.slane %v15, %v102
  %v105 = vunpack.c.l.s4 1966171168
  %v106 = vunpack.c.0.s8 %v105
  %v107 = vlaneseq
  %v108 = vshrl.u32 %v107, 7
  %v109 = vsub.s32 %v106, %v108
  %v110 = vrot.slane %v96, %v109
  %v111 = vcombine.high %v103, %v103
  %v113 = vunpack.c.l.s4 1966171168
  %v114 = vunpack.c.0.s8 %v113
  %v115 = vlaneseq
  %v116 = vshrl.u32 %v115, 7
  %v117 = vsub.s32 %v114, %v116
  %v118 = vrot.slane %v103, %v117
  %v120 = vunpack.c.l.s4 1966171168
  %v121 = vunpack.c.0.s8 %v120
  %v122 = vlaneseq
  %v123 = vshrl.u32 %v122, 7
  %v124 = vsub.s32 %v121, %v123
  %v125 = vrot.slane %v110, %v124
  %v127 = vunpack.c.l.s4 1966171168
  %v128 = vunpack.c.0.s8 %v127
  %v129 = vlaneseq
  %v130 = vshrl.u32 %v129, 7
  %v131 = vsub.s32 %v128, %v130
  %v132 = vrot.slane %v111, %v131
  %v133 = vcombine.high %v118, %v118
  %v134 = vcombine.high %v132, %v132
  %v211 = vunpack.c.l.b16 %v16
  %v212 = vunpack.c.l.b16 %v17
  %v213 = vunpack.c.l.b16 %v18
  %v214 = vunpack.c.l.b16 %v19
  %v215 = vunpack.c.l.b16 %v20
  %v216 = vunpack.c.l.b16 %v21
  %v217 = vunpack.c.l.b16 %v22
  %v218 = vunpack.c.l.b16 %v23
  %v219 = vunpack.c.l.b16 %v24
  %v220 = vunpack.c.l.b16 %v25
  %v221 = vunpack.c.l.b16 %v26
  %v222 = vunpack.c.l.b16 %v27
  %v223 = vunpack.c.l.b16 %v28
  %v224 = vunpack.c.l.b16 %v29
  %v225 = vunpack.c.l.b16 %v30
  %v226 = vunpack.c.l.b16 %v31
  %v227 = vunpack.c.l.b16 %v32
  %v228 = vunpack.c.l.b16 %v33
  %v229 = vunpack.c.l.b16 %v34
  %v230 = vunpack.c.l.b16 %v35
  %v231 = vunpack.c.l.b16 %v36
  %v232 = vunpack.c.l.b16 %v37
  %v233 = vunpack.c.l.b16 %v38
  %v234 = vunpack.c.l.b16 %v39
  %v235 = vunpack.c.l.b16 %v40
  %v236 = vunpack.c.l.b16 %v41
  %v237 = vunpack.c.l.b16 %v42
  %v238 = vunpack.c.l.b16 %v43
  %v239 = vunpack.c.l.b16 %v44
  %v240 = vunpack.c.l.b16 %v45
  %v241 = vunpack.c.l.b16 %v46
  %v242 = vunpack.c.l.b16 %v47
  %v243 = vunpack.c.l.b16 %v48
  %v244 = vunpack.c.l.b16 %v49
  %v245 = vunpack.c.l.b16 %v50
  %v246 = vunpack.c.l.b16 %v51
  %v247 = vunpack.c.l.b16 %v52
  %v248 = vunpack.c.l.b16 %v53
  %v249 = vunpack.c.l.b16 %v54
  %v250 = vunpack.c.l.b16 %v55
  %v251 = vunpack.c.l.b16 %v56
  %v252 = vunpack.c.l.b16 %v57
  %v253 = vunpack.c.l.b16 %v58
  %v254 = vunpack.c.l.b16 %v59
  %v255 = vunpack.c.l.b16 %v60
  %v256 = vunpack.c.l.b16 %v61
  %v257 = vunpack.c.l.b16 %v62
  %v258 = vunpack.c.l.b16 %v63
  %v259 = vunpack.c.l.b16 %v64
  %v260 = vunpack.c.l.b16 %v65
  %v261 = vunpack.c.l.b16 %v66
  %v262 = vunpack.c.l.b16 %v67
  %v263 = vunpack.c.l.b16 %v68
  %v264 = vunpack.c.l.b16 %v69
  %v265 = vunpack.c.l.b16 %v70
  %v266 = vunpack.c.l.b16 %v71
  %v267 = vunpack.c.l.b16 %v72
  %v268 = vunpack.c.l.b16 %v73
  %v269 = vunpack.c.l.b16 %v74
  %v270 = vunpack.c.l.b16 %v75
  %v271 = vunpack.c.l.b16 %v76
  %v272 = vunpack.c.l.b16 %v77
  %v273 = vunpack.c.l.b16 %v78
  %v274 = vunpack.c.l.b16 %v79
  %v275 = vunpack.c.l.b16 %v80
  %v276 = vunpack.c.l.b16 %v81
  %v277 = vunpack.c.l.b16 %v82
  %v278 = vunpack.c.l.b16 %v83
  %v279 = vunpack.c.l.b16 %v84
  %v280 = vunpack.c.l.b16 %v85
  %v281 = vunpack.c.l.b16 %v86
  %v282 = vunpack.c.l.b16 %v87
  %v283 = vpack.c.b16 %v212, %v211
  %v284 = vpack.c.b16 %v214, %v213
  %v285 = vpack.c.b16 %v216, %v215
  %v286 = vpack.c.b16 %v218, %v217
  %v287 = vpack.c.b16 %v220, %v219
  %v288 = vpack.c.b16 %v222, %v221
  %v289 = vpack.c.b16 %v224, %v223
  %v290 = vpack.c.b16 %v226, %v225
  %v291 = vpack.c.b16 %v228, %v227
  %v292 = vpack.c.b16 %v230, %v229
  %v293 = vpack.c.b16 %v232, %v231
  %v294 = vpack.c.b16 %v234, %v233
  %v295 = vpack.c.b16 %v236, %v235
  %v296 = vpack.c.b16 %v238, %v237
  %v297 = vpack.c.b16 %v240, %v239
  %v298 = vpack.c.b16 %v242, %v241
  %v299 = vpack.c.b16 %v244, %v243
  %v300 = vpack.c.b16 %v246, %v245
  %v301 = vpack.c.b16 %v248, %v247
  %v302 = vpack.c.b16 %v250, %v249
  %v303 = vpack.c.b16 %v252, %v251
  %v304 = vpack.c.b16 %v254, %v253
  %v305 = vpack.c.b16 %v256, %v255
  %v306 = vpack.c.b16 %v258, %v257
  %v307 = vpack.c.b16 %v260, %v259
  %v308 = vpack.c.b16 %v262, %v261
  %v309 = vpack.c.b16 %v264, %v263
  %v310 = vpack.c.b16 %v266, %v265
  %v311 = vpack.c.b16 %v268, %v267
  %v312 = vpack.c.b16 %v270, %v269
  %v313 = vpack.c.b16 %v272, %v271
  %v314 = vpack.c.b16 %v274, %v273
  %v315 = vpack.c.b16 %v276, %v275
  %v316 = vpack.c.b16 %v278, %v277
  %v317 = vpack.c.b16 %v280, %v279
  %v318 = vpack.c.b16 %v282, %v281
  %vm355 = vcmask 523264
  %v357 = vsel %vm355, %v125, 0
  %359 = vmatprep.subr.bf16.mxu0 0
  %360 = vmatpush1.bf16.msra.mxu0 %v290
  %361 = vmatprep.subr.bf16.mxu0 0
  %362 = vmatpush1.bf16.msra.mxu0 %v289
  %363 = vmatprep.subr.bf16.mxu0 0
  %364 = vmatpush1.bf16.msra.mxu0 %v288
  %365 = vmatprep.subr.bf16.mxu0 0
  %366 = vmatpush1.bf16.msra.mxu0 %v287
  %367 = vmatprep.subr.bf16.mxu0 0
  %368 = vmatpush1.bf16.msra.mxu0 %v286
  %369 = vmatprep.subr.bf16.mxu0 0
  %370 = vmatpush1.bf16.msra.mxu0 %v285
  %371 = vmatprep.subr.bf16.mxu0 0
  %372 = vmatpush1.bf16.msra.mxu0 %v284
  %373 = vmatprep.subr.bf16.mxu0 0
  %374 = vmatpush1.bf16.msra.mxu0 %v283
  %375 = vmatprep.subr.bf16.mxu0 0
  %376 = vmatpush2.bf16.msra.mxu0 %v298
  %377 = vmatprep.subr.bf16.mxu0 0
  %378 = vmatpush2.bf16.msra.mxu0 %v297
  %379 = vmatprep.subr.bf16.mxu0 0
  %380 = vmatpush2.bf16.msra.mxu0 %v296
  %381 = vmatprep.subr.bf16.mxu0 0
  %382 = vmatpush2.bf16.msra.mxu0 %v295
  %383 = vmatprep.subr.bf16.mxu0 0
  %384 = vmatpush2.bf16.msra.mxu0 %v294
  %385 = vmatprep.subr.bf16.mxu0 0
  %386 = vmatpush2.bf16.msra.mxu0 %v293
  %387 = vmatprep.subr.bf16.mxu0 0
  %388 = vmatpush2.bf16.msra.mxu0 %v292
  %389 = vmatprep.subr.bf16.mxu0 0
  %390 = vmatpush2.bf16.msra.mxu0 %v291
  %391 = vmatprep.mubr.bf16.mxu0 %v132
  %392 = vmatmul.mubr.bf16.gmra.mxu0 %v118
  %v393 = vpop.f32.mrf.mxu0
  %v394 = vadd.f32 %v93, %v393
  %v395 = vpop.f32.mrf.mxu0
  %v396 = vpop.f32.mrf.mxu0
  %v397 = vpop.f32.mrf.mxu0
  %398 = vdwg.mxu0
  %399 = vmatprep.subr.bf16.mxu0 0
  %400 = vmatpush1.bf16.msra.mxu0 %v306
  %401 = vmatprep.subr.bf16.mxu0 0
  %402 = vmatpush1.bf16.msra.mxu0 %v305
  %403 = vmatprep.subr.bf16.mxu0 0
  %404 = vmatpush1.bf16.msra.mxu0 %v304
  %405 = vmatprep.subr.bf16.mxu0 0
  %406 = vmatpush1.bf16.msra.mxu0 %v303
  %407 = vmatprep.subr.bf16.mxu0 0
  %408 = vmatpush1.bf16.msra.mxu0 %v302
  %409 = vmatprep.subr.bf16.mxu0 0
  %410 = vmatpush1.bf16.msra.mxu0 %v301
  %411 = vmatprep.subr.bf16.mxu0 0
  %412 = vmatpush1.bf16.msra.mxu0 %v300
  %413 = vmatprep.subr.bf16.mxu0 0
  %414 = vmatpush1.bf16.msra.mxu0 %v299
  %415 = vmatprep.subr.bf16.mxu0 0
  %416 = vmatpush2.bf16.msra.mxu0 %v314
  %417 = vmatprep.subr.bf16.mxu0 0
  %418 = vmatpush2.bf16.msra.mxu0 %v313
  %419 = vmatprep.subr.bf16.mxu0 0
  %420 = vmatpush2.bf16.msra.mxu0 %v312
  %421 = vmatprep.subr.bf16.mxu0 0
  %422 = vmatpush2.bf16.msra.mxu0 %v311
  %423 = vmatprep.subr.bf16.mxu0 0
  %424 = vmatpush2.bf16.msra.mxu0 %v310
  %425 = vmatprep.subr.bf16.mxu0 0
  %426 = vmatpush2.bf16.msra.mxu0 %v309
  %427 = vmatprep.subr.bf16.mxu0 0
  %428 = vmatpush2.bf16.msra.mxu0 %v308
  %429 = vmatprep.subr.bf16.mxu0 0
  %430 = vmatpush2.bf16.msra.mxu0 %v307
  %431 = vmatprep.mubr.bf16.mxu0 %v134
  %432 = vmatmul.mubr.bf16.gmra.mxu0 %v133
  %v433 = vpop.f32.mrf.mxu0
  %v434 = vadd.f32 %v394, %v433
  %v435 = vpop.f32.mrf.mxu0
  %v436 = vpop.f32.mrf.mxu0
  %v437 = vpop.f32.mrf.mxu0
  %438 = vdwg.mxu0
  %439 = vmatprep.subr.bf16.mxu0 0
  %440 = vmatpush1.bf16.msra.mxu0 0
  %441 = vmatprep.subr.bf16.mxu0 0
  %442 = vmatpush1.bf16.msra.mxu0 0
  %443 = vmatprep.subr.bf16.mxu0 0
  %444 = vmatpush1.bf16.msra.mxu0 0
  %445 = vmatprep.subr.bf16.mxu0 0
  %446 = vmatpush1.bf16.msra.mxu0 0
  %447 = vmatprep.subr.bf16.mxu0 0
  %448 = vmatpush1.bf16.msra.mxu0 %v318
  %449 = vmatprep.subr.bf16.mxu0 0
  %450 = vmatpush1.bf16.msra.mxu0 %v317
  %451 = vmatprep.subr.bf16.mxu0 0
  %452 = vmatpush1.bf16.msra.mxu0 %v316
  %453 = vmatprep.subr.bf16.mxu0 0
  %454 = vmatpush1.bf16.msra.mxu0 %v315
  %455 = vmatprep.subr.bf16.mxu0 0
  %456 = vmatpush2.bf16.msra.mxu0 0
  %457 = vmatprep.subr.bf16.mxu0 0
  %458 = vmatpush2.bf16.msra.mxu0 0
  %459 = vmatprep.subr.bf16.mxu0 0
  %460 = vmatpush2.bf16.msra.mxu0 0
  %461 = vmatprep.subr.bf16.mxu0 0
  %462 = vmatpush2.bf16.msra.mxu0 0
  %463 = vmatprep.subr.bf16.mxu0 0
  %464 = vmatpush2.bf16.msra.mxu0 0
  %465 = vmatprep.subr.bf16.mxu0 0
  %466 = vmatpush2.bf16.msra.mxu0 0
  %467 = vmatprep.subr.bf16.mxu0 0
  %468 = vmatpush2.bf16.msra.mxu0 0
  %469 = vmatprep.subr.bf16.mxu0 0
  %470 = vmatpush2.bf16.msra.mxu0 0
  %471 = vmatprep.mubr.bf16.mxu0 0
  %472 = vmatmul.mubr.bf16.gmra.mxu0 %v357
  %v473 = vpop.f32.mrf.mxu0
  %v474 = vadd.f32 %v434, %v473
  %v475 = vpop.f32.mrf.mxu0
  %v476 = vpop.f32.mrf.mxu0
  %v477 = vpop.f32.mrf.mxu0
  %478 = vdwg.mxu0
  %v479 = vmax.f32 %v474, 0.0
  %v480 = vpack.c.bf16 %v479, %v479
  %481 = vst [vmem:[%s3] sm:$0x1] %v480
  // Predicated region
  $region14: #{dqn_forward.6} parent=0 // pred_check
    _
  $region15: #{dqn_forward.6} parent=0 // pred_check_branch
    %483 = sbr.rel (0) target = $region17
  $region16: #{dqn_forward.6} parent=0 // pred_region
    _
  $region17: #{dqn_forward.6} parent=0 // pred_fallthru
    _
  // Predicated region
  $region18: #{dqn_forward.6} parent=0 // pred_check
    _
  $region19: #{dqn_forward.6} parent=0 // pred_check_branch
    %485 = sbr.rel (0) target = $region21
  $region20: #{dqn_forward.6} parent=0 // pred_region
    _
  $region21: #{dqn_forward.6} parent=0 // pred_fallthru
    _

// kernel: dqn_forward.7
$region0: #{dqn_forward.7}
  #allocation0 [shape = 'u32[]', space=smem, size = 0x4, offset = 0x4, fixed_abs, tag = 'smem constant byte address 0x4 - core index']
  #allocation1 [shape = 'u32[144,128]{1,0:T(1,128)}', space=vmem, size = 0x12000, scoped, tag = 'internal scratch']
  %s0 = inlined_call_operand.vmem [shape: bf16[2,64], index: 0, kind: input, shape index: {}]
  %s1 = inlined_call_operand.vmem [shape: bf16[64,512], index: 1, kind: input, shape index: {}]
  %s2 = inlined_call_operand.vmem [shape: f32[1,512], index: 2, kind: input, shape index: {}]
  %s3 = inlined_call_operand.vmem [shape: bf16[512,128], index: 3, kind: input, shape index: {}]
  %s4 = inlined_call_operand.vmem [shape: f32[1,128], index: 4, kind: input, shape index: {}]
  %s5 = inlined_call_operand.hbm [shape: f32[2,128], index: 5, kind: output, shape index: {}]
  %s6 = sld [smem:[#allocation0]]
  $region30: #{dqn_forward.7} parent=0
    _
  %s8 = ssub.s32 1, %s6
  %s9 = scalar_select 0, %s8, %s6
  $region1: #{dqn_forward.7} parent=0
    #allocation2 [shape = 'u8[1024]{0}', space=vmem, size = 0x400, scoped, tag = 'output window, operand 0, single buffered']
    #allocation3 [shape = 's32[1]{0}', space=sflag, size = 0x4, scoped, tag = 'scoped memory for dqn_forward.7']
    %10 = vsyncpa [#allocation3], 0
    // Predicated region
    $region2: #{dqn_forward.7} parent=1 // pred_check
      _
    $region3: #{dqn_forward.7} parent=1 // pred_check_branch
      %12 = sbr.rel (0) target = $region5
    $region4: #{dqn_forward.7} parent=1 // pred_region
      _
    $region5: #{dqn_forward.7} parent=1 // pred_fallthru
      _
    // Predicated region
    $region6: #{dqn_forward.7} parent=1 // pred_check
      _
    $region7: #{dqn_forward.7} parent=1 // pred_check_branch
      %14 = sbr.rel (0) target = $region9
    $region8: #{dqn_forward.7} parent=1 // pred_region
      _
    $region9: #{dqn_forward.7} parent=1 // pred_fallthru
      _
    // Predicated region
    $region10: #{dqn_forward.7} parent=1 // pred_check
      _
    $region11: #{dqn_forward.7} parent=1 // pred_check_branch
      %16 = sbr.rel (0) target = $region13
    $region12: #{dqn_forward.7} parent=1 // pred_region
      _
    $region13: #{dqn_forward.7} parent=1 // pred_fallthru
      _
    // Predicated region
    $region14: #{dqn_forward.7} parent=1 // pred_check
      _
    $region15: #{dqn_forward.7} parent=1 // pred_check_branch
      %18 = sbr.rel (0) target = $region17
    $region16: #{dqn_forward.7} parent=1 // pred_region
      _
    $region17: #{dqn_forward.7} parent=1 // pred_fallthru
      _
    // Predicated region
    $region18: #{dqn_forward.7} parent=1 // pred_check
      _
    $region19: #{dqn_forward.7} parent=1 // pred_check_branch
      %20 = sbr.rel (0) target = $region21
    $region20: #{dqn_forward.7} parent=1 // pred_region
      _
    $region21: #{dqn_forward.7} parent=1 // pred_fallthru
      _
    %v22 = vld [vmem:[%s0] sm:$0x1]
    %v23 = vld [vmem:[%s1] sm:$0xff]
    %v24 = vld [vmem:[%s1 + $0x8] sm:$0xff]
    %v25 = vld [vmem:[%s1 + $0x10] sm:$0xff]
    %v26 = vld [vmem:[%s1 + $0x18] sm:$0xff]
    %v27 = vld [vmem:[%s1 + $0x20] sm:$0xff]
    %v28 = vld [vmem:[%s1 + $0x28] sm:$0xff]
    %v29 = vld [vmem:[%s1 + $0x30] sm:$0xff]
    %v30 = vld [vmem:[%s1 + $0x38] sm:$0xff]
    %v31 = vld [vmem:[%s1 + $0x40] sm:$0xff]
    %v32 = vld [vmem:[%s1 + $0x48] sm:$0xff]
    %v33 = vld [vmem:[%s1 + $0x50] sm:$0xff]
    %v34 = vld [vmem:[%s1 + $0x58] sm:$0xff]
    %v35 = vld [vmem:[%s1 + $0x60] sm:$0xff]
    %v36 = vld [vmem:[%s1 + $0x68] sm:$0xff]
    %v37 = vld [vmem:[%s1 + $0x70] sm:$0xff]
    %v38 = vld [vmem:[%s1 + $0x78] sm:$0xff]
    %v39 = vld [vmem:[%s2] sm:$0xf]
    %v41 = vlaneseq
    %v42 = vshrl.u32 %v41, 7
    %v43 = vsub.s32 0, %v42
    %v44 = vrot.slane %v39, %v43
    %v45 = vlaneseq
    %v46 = vshrl.u32 %v45, 7
    %v47 = vsub.s32 1, %v46
    %v48 = vrot.slane %v39, %v47
    %v49 = vlaneseq
    %v50 = vshrl.u32 %v49, 7
    %v51 = vsub.s32 2, %v50
    %v52 = vrot.slane %v39, %v51
    %v53 = vlaneseq
    %v54 = vshrl.u32 %v53, 7
    %v55 = vsub.s32 3, %v54
    %v56 = vrot.slane %v39, %v55
    %v77 = vunpack.c.l.b16 %v23
    %v78 = vunpack.c.h.b16 %v23
    %v79 = vunpack.c.l.b16 %v24
    %v80 = vunpack.c.h.b16 %v24
    %v81 = vunpack.c.l.b16 %v25
    %v82 = vunpack.c.h.b16 %v25
    %v83 = vunpack.c.l.b16 %v26
    %v84 = vunpack.c.h.b16 %v26
    %v85 = vunpack.c.l.b16 %v27
    %v86 = vunpack.c.h.b16 %v27
    %v87 = vunpack.c.l.b16 %v28
    %v88 = vunpack.c.h.b16 %v28
    %v89 = vunpack.c.l.b16 %v29
    %v90 = vunpack.c.h.b16 %v29
    %v91 = vunpack.c.l.b16 %v30
    %v92 = vunpack.c.h.b16 %v30
    %v93 = vunpack.c.l.b16 %v31
    %v94 = vunpack.c.h.b16 %v31
    %v95 = vunpack.c.l.b16 %v32
    %v96 = vunpack.c.h.b16 %v32
    %v97 = vunpack.c.l.b16 %v33
    %v98 = vunpack.c.h.b16 %v33
    %v99 = vunpack.c.l.b16 %v34
    %v100 = vunpack.c.h.b16 %v34
    %v101 = vunpack.c.l.b16 %v35
    %v102 = vunpack.c.h.b16 %v35
    %v103 = vunpack.c.l.b16 %v36
    %v104 = vunpack.c.h.b16 %v36
    %v105 = vunpack.c.l.b16 %v37
    %v106 = vunpack.c.h.b16 %v37
    %v107 = vunpack.c.l.b16 %v38
    %v108 = vunpack.c.h.b16 %v38
    %v109 = vpack.c.b16 %v81, %v77
    %v110 = vpack.c.b16 %v82, %v78
    %v111 = vpack.c.b16 %v83, %v79
    %v112 = vpack.c.b16 %v84, %v80
    %v113 = vpack.c.b16 %v89, %v85
    %v114 = vpack.c.b16 %v90, %v86
    %v115 = vpack.c.b16 %v91, %v87
    %v116 = vpack.c.b16 %v92, %v88
    %v117 = vpack.c.b16 %v97, %v93
    %v118 = vpack.c.b16 %v98, %v94
    %v119 = vpack.c.b16 %v99, %v95
    %v120 = vpack.c.b16 %v100, %v96
    %v121 = vpack.c.b16 %v105, %v101
    %v122 = vpack.c.b16 %v106, %v102
    %v123 = vpack.c.b16 %v107, %v103
    %v124 = vpack.c.b16 %v108, %v104
    %vm141 = vcmask 523264
    %v143 = vsel %vm141, %v22, 0
    %145 = vmatprep.subr.bf16.mxu0 0
    %146 = vmatpush1.bf16.msra.mxu0 0
    %147 = vmatprep.subr.bf16.mxu0 0
    %148 = vmatpush1.bf16.msra.mxu0 0
    %149 = vmatprep.subr.bf16.mxu0 0
    %150 = vmatpush1.bf16.msra.mxu0 0
    %151 = vmatprep.subr.bf16.mxu0 0
    %152 = vmatpush1.bf16.msra.mxu0 0
    %153 = vmatprep.subr.bf16.mxu0 %v122
    %154 = vmatpush1.bf16.msra.mxu0 %v121
    %155 = vmatprep.subr.bf16.mxu0 %v118
    %156 = vmatpush1.bf16.msra.mxu0 %v117
    %157 = vmatprep.subr.bf16.mxu0 %v114
    %158 = vmatpush1.bf16.msra.mxu0 %v113
    %159 = vmatprep.subr.bf16.mxu0 %v110
    %160 = vmatpush1.bf16.msra.mxu0 %v109
    %161 = vmatprep.subr.bf16.mxu0 0
    %162 = vmatpush2.bf16.msra.mxu0 0
    %163 = vmatprep.subr.bf16.mxu0 0
    %164 = vmatpush2.bf16.msra.mxu0 0
    %165 = vmatprep.subr.bf16.mxu0 0
    %166 = vmatpush2.bf16.msra.mxu0 0
    %167 = vmatprep.subr.bf16.mxu0 0
    %168 = vmatpush2.bf16.msra.mxu0 0
    %169 = vmatprep.subr.bf16.mxu0 0
    %170 = vmatpush2.bf16.msra.mxu0 0
    %171 = vmatprep.subr.bf16.mxu0 0
    %172 = vmatpush2.bf16.msra.mxu0 0
    %173 = vmatprep.subr.bf16.mxu0 0
    %174 = vmatpush2.bf16.msra.mxu0 0
    %175 = vmatprep.subr.bf16.mxu0 0
    %176 = vmatpush2.bf16.msra.mxu0 0
    %177 = vmatprep.mubr.bf16.mxu0 0
    %178 = vmatmul.mubr.bf16.gmra.mxu0 %v143
    %v179 = vpop.f32.mrf.mxu0
    %v180 = vadd.f32 %v44, %v179
    %v181 = vpop.f32.mrf.mxu0
    %v182 = vadd.f32 %v48, %v181
    %v183 = vpop.f32.mrf.mxu0
    %v184 = vpop.f32.mrf.mxu0
    %185 = vdwg.mxu0
    %186 = vmatprep.subr.bf16.mxu0 0
    %187 = vmatpush1.bf16.msra.mxu0 0
    %188 = vmatprep.subr.bf16.mxu0 0
    %189 = vmatpush1.bf16.msra.mxu0 0
    %190 = vmatprep.subr.bf16.mxu0 0
    %191 = vmatpush1.bf16.msra.mxu0 0
    %192 = vmatprep.subr.bf16.mxu0 0
    %193 = vmatpush1.bf16.msra.mxu0 0
    %194 = vmatprep.subr.bf16.mxu0 %v124
    %195 = vmatpush1.bf16.msra.mxu0 %v123
    %196 = vmatprep.subr.bf16.mxu0 %v120
    %197 = vmatpush1.bf16.msra.mxu0 %v119
    %198 = vmatprep.subr.bf16.mxu0 %v116
    %199 = vmatpush1.bf16.msra.mxu0 %v115
    %200 = vmatprep.subr.bf16.mxu0 %v112
    %201 = vmatpush1.bf16.msra.mxu0 %v111
    %202 = vmatprep.subr.bf16.mxu0 0
    %203 = vmatpush2.bf16.msra.mxu0 0
    %204 = vmatprep.subr.bf16.mxu0 0
    %205 = vmatpush2.bf16.msra.mxu0 0
    %206 = vmatprep.subr.bf16.mxu0 0
    %207 = vmatpush2.bf16.msra.mxu0 0
    %208 = vmatprep.subr.bf16.mxu0 0
    %209 = vmatpush2.bf16.msra.mxu0 0
    %210 = vmatprep.subr.bf16.mxu0 0
    %211 = vmatpush2.bf16.msra.mxu0 0
    %212 = vmatprep.subr.bf16.mxu0 0
    %213 = vmatpush2.bf16.msra.mxu0 0
    %214 = vmatprep.subr.bf16.mxu0 0
    %215 = vmatpush2.bf16.msra.mxu0 0
    %216 = vmatprep.subr.bf16.mxu0 0
    %217 = vmatpush2.bf16.msra.mxu0 0
    %218 = vmatprep.mubr.bf16.mxu0 0
    %219 = vmatmul.mubr.bf16.gmra.mxu0 %v143
    %v220 = vpop.f32.mrf.mxu0
    %v221 = vadd.f32 %v52, %v220
    %v222 = vpop.f32.mrf.mxu0
    %v223 = vadd.f32 %v56, %v222
    %v224 = vpop.f32.mrf.mxu0
    %v225 = vpop.f32.mrf.mxu0
    %226 = vdwg.mxu0
    %v227 = vmax.f32 %v180, 0.0
    %v228 = vmax.f32 %v182, 0.0
    %v229 = vmax.f32 %v221, 0.0
    %v230 = vmax.f32 %v223, 0.0
    %v231 = vpack.c.bf16 %v227, %v227
    %v232 = vpack.c.bf16 %v228, %v228
    %v233 = vpack.c.bf16 %v229, %v229
    %v234 = vpack.c.bf16 %v230, %v230
    %v235 = vld [vmem:[%s3] sm:$0xf]
    %v236 = vld [vmem:[%s3 + $0x4] sm:$0xf]
    %v237 = vld [vmem:[%s3 + $0x8] sm:$0xf]
    %v238 = vld [vmem:[%s3 + $0xc] sm:$0xf]
    %v239 = vld [vmem:[%s3 + $0x10] sm:$0xf]
    %v240 = vld [vmem:[%s3 + $0x14] sm:$0xf]
    %v241 = vld [vmem:[%s3 + $0x18] sm:$0xf]
    %v242 = vld [vmem:[%s3 + $0x1c] sm:$0xf]
    %v243 = vld [vmem:[%s3 + $0x20] sm:$0xf]
    %v244 = vld [vmem:[%s3 + $0x24] sm:$0xf]
    %v245 = vld [vmem:[%s3 + $0x28] sm:$0xf]
    %v246 = vld [vmem:[%s3 + $0x2c] sm:$0xf]
    %v247 = vld [vmem:[%s3 + $0x30] sm:$0xf]
    %v248 = vld [vmem:[%s3 + $0x34] sm:$0xf]
    %v249 = vld [vmem:[%s3 + $0x38] sm:$0xf]
    %v250 = vld [vmem:[%s3 + $0x3c] sm:$0xf]
    %v251 = vld [vmem:[%s3 + $0x40] sm:$0xf]
    %v252 = vld [vmem:[%s3 + $0x44] sm:$0xf]
    %v253 = vld [vmem:[%s3 + $0x48] sm:$0xf]
    %v254 = vld [vmem:[%s3 + $0x4c] sm:$0xf]
    %v255 = vld [vmem:[%s3 + $0x50] sm:$0xf]
    %v256 = vld [vmem:[%s3 + $0x54] sm:$0xf]
    %v257 = vld [vmem:[%s3 + $0x58] sm:$0xf]
    %v258 = vld [vmem:[%s3 + $0x5c] sm:$0xf]
    %v259 = vld [vmem:[%s3 + $0x60] sm:$0xf]
    %v260 = vld [vmem:[%s3 + $0x64] sm:$0xf]
    %v261 = vld [vmem:[%s3 + $0x68] sm:$0xf]
    %v262 = vld [vmem:[%s3 + $0x6c] sm:$0xf]
    %v263 = vld [vmem:[%s3 + $0x70] sm:$0xf]
    %v264 = vld [vmem:[%s3 + $0x74] sm:$0xf]
    %v265 = vld [vmem:[%s3 + $0x78] sm:$0xf]
    %v266 = vld [vmem:[%s3 + $0x7c] sm:$0xf]
    %v267 = vld [vmem:[%s3 + $0x80] sm:$0xf]
    %v268 = vld [vmem:[%s3 + $0x84] sm:$0xf]
    %v269 = vld [vmem:[%s3 + $0x88] sm:$0xf]
    %v270 = vld [vmem:[%s3 + $0x8c] sm:$0xf]
    %v271 = vld [vmem:[%s3 + $0x90] sm:$0xf]
    %v272 = vld [vmem:[%s3 + $0x94] sm:$0xf]
    %v273 = vld [vmem:[%s3 + $0x98] sm:$0xf]
    %v274 = vld [vmem:[%s3 + $0x9c] sm:$0xf]
    %v275 = vld [vmem:[%s3 + $0xa0] sm:$0xf]
    %v276 = vld [vmem:[%s3 + $0xa4] sm:$0xf]
    %v277 = vld [vmem:[%s3 + $0xa8] sm:$0xf]
    %v278 = vld [vmem:[%s3 + $0xac] sm:$0xf]
    %v279 = vld [vmem:[%s3 + $0xb0] sm:$0xf]
    %v280 = vld [vmem:[%s3 + $0xb4] sm:$0xf]
    %v281 = vld [vmem:[%s3 + $0xb8] sm:$0xf]
    %v282 = vld [vmem:[%s3 + $0xbc] sm:$0xf]
    %v283 = vld [vmem:[%s3 + $0xc0] sm:$0xf]
    %v284 = vld [vmem:[%s3 + $0xc4] sm:$0xf]
    %v285 = vld [vmem:[%s3 + $0xc8] sm:$0xf]
    %v286 = vld [vmem:[%s3 + $0xcc] sm:$0xf]
    %v287 = vld [vmem:[%s3 + $0xd0] sm:$0xf]
    %v288 = vld [vmem:[%s3 + $0xd4] sm:$0xf]
    %v289 = vld [vmem:[%s3 + $0xd8] sm:$0xf]
    %v290 = vld [vmem:[%s3 + $0xdc] sm:$0xf]
    %v291 = vld [vmem:[%s3 + $0xe0] sm:$0xf]
    %v292 = vld [vmem:[%s3 + $0xe4] sm:$0xf]
    %v293 = vld [vmem:[%s3 + $0xe8] sm:$0xf]
    %v294 = vld [vmem:[%s3 + $0xec] sm:$0xf]
    %v295 = vld [vmem:[%s3 + $0xf0] sm:$0xf]
    %v296 = vld [vmem:[%s3 + $0xf4] sm:$0xf]
    %v297 = vld [vmem:[%s3 + $0xf8] sm:$0xf]
    %v298 = vld [vmem:[%s3 + $0xfc] sm:$0xf]
    %v299 = vld [vmem:[%s4] sm:$0x1]
    %v301 = vlaneseq
    %v302 = vshrl.u32 %v301, 7
    %v303 = vsub.s32 0, %v302
    %v304 = vrot.slane %v299, %v303
    %v370 = vunpack.c.l.b16 %v235
    %v371 = vunpack.c.l.b16 %v236
    %v372 = vunpack.c.l.b16 %v237
    %v373 = vunpack.c.l.b16 %v238
    %v374 = vunpack.c.l.b16 %v239
    %v375 = vunpack.c.l.b16 %v240
    %v376 = vunpack.c.l.b16 %v241
    %v377 = vunpack.c.l.b16 %v242
    %v378 = vunpack.c.l.b16 %v243
    %v379 = vunpack.c.l.b16 %v244
    %v380 = vunpack.c.l.b16 %v245
    %v381 = vunpack.c.l.b16 %v246
    %v382 = vunpack.c.l.b16 %v247
    %v383 = vunpack.c.l.b16 %v248
    %v384 = vunpack.c.l.b16 %v249
    %v385 = vunpack.c.l.b16 %v250
    %v386 = vunpack.c.l.b16 %v251
    %v387 = vunpack.c.l.b16 %v252
    %v388 = vunpack.c.l.b16 %v253
    %v389 = vunpack.c.l.b16 %v254
    %v390 = vunpack.c.l.b16 %v255
    %v391 = vunpack.c.l.b16 %v256
    %v392 = vunpack.c.l.b16 %v257
    %v393 = vunpack.c.l.b16 %v258
    %v394 = vunpack.c.l.b16 %v259
    %v395 = vunpack.c.l.b16 %v260
    %v396 = vunpack.c.l.b16 %v261
    %v397 = vunpack.c.l.b16 %v262
    %v398 = vunpack.c.l.b16 %v263
    %v399 = vunpack.c.l.b16 %v264
    %v400 = vunpack.c.l.b16 %v265
    %v401 = vunpack.c.l.b16 %v266
    %v402 = vunpack.c.l.b16 %v267
    %v403 = vunpack.c.l.b16 %v268
    %v404 = vunpack.c.l.b16 %v269
    %v405 = vunpack.c.l.b16 %v270
    %v406 = vunpack.c.l.b16 %v271
    %v407 = vunpack.c.l.b16 %v272
    %v408 = vunpack.c.l.b16 %v273
    %v409 = vunpack.c.l.b16 %v274
    %v410 = vunpack.c.l.b16 %v275
    %v411 = vunpack.c.l.b16 %v276
    %v412 = vunpack.c.l.b16 %v277
    %v413 = vunpack.c.l.b16 %v278
    %v414 = vunpack.c.l.b16 %v279
    %v415 = vunpack.c.l.b16 %v280
    %v416 = vunpack.c.l.b16 %v281
    %v417 = vunpack.c.l.b16 %v282
    %v418 = vunpack.c.l.b16 %v283
    %v419 = vunpack.c.l.b16 %v284
    %v420 = vunpack.c.l.b16 %v285
    %v421 = vunpack.c.l.b16 %v286
    %v422 = vunpack.c.l.b16 %v287
    %v423 = vunpack.c.l.b16 %v288
    %v424 = vunpack.c.l.b16 %v289
    %v425 = vunpack.c.l.b16 %v290
    %v426 = vunpack.c.l.b16 %v291
    %v427 = vunpack.c.l.b16 %v292
    %v428 = vunpack.c.l.b16 %v293
    %v429 = vunpack.c.l.b16 %v294
    %v430 = vunpack.c.l.b16 %v295
    %v431 = vunpack.c.l.b16 %v296
    %v432 = vunpack.c.l.b16 %v297
    %v433 = vunpack.c.l.b16 %v298
    %v434 = vpack.c.b16 %v371, %v370
    %v435 = vpack.c.b16 %v373, %v372
    %v436 = vpack.c.b16 %v375, %v374
    %v437 = vpack.c.b16 %v377, %v376
    %v438 = vpack.c.b16 %v379, %v378
    %v439 = vpack.c.b16 %v381, %v380
    %v440 = vpack.c.b16 %v383, %v382
    %v441 = vpack.c.b16 %v385, %v384
    %v442 = vpack.c.b16 %v387, %v386
    %v443 = vpack.c.b16 %v389, %v388
    %v444 = vpack.c.b16 %v391, %v390
    %v445 = vpack.c.b16 %v393, %v392
    %v446 = vpack.c.b16 %v395, %v394
    %v447 = vpack.c.b16 %v397, %v396
    %v448 = vpack.c.b16 %v399, %v398
    %v449 = vpack.c.b16 %v401, %v400
    %v450 = vpack.c.b16 %v403, %v402
    %v451 = vpack.c.b16 %v405, %v404
    %v452 = vpack.c.b16 %v407, %v406
    %v453 = vpack.c.b16 %v409, %v408
    %v454 = vpack.c.b16 %v411, %v410
    %v455 = vpack.c.b16 %v413, %v412
    %v456 = vpack.c.b16 %v415, %v414
    %v457 = vpack.c.b16 %v417, %v416
    %v458 = vpack.c.b16 %v419, %v418
    %v459 = vpack.c.b16 %v421, %v420
    %v460 = vpack.c.b16 %v423, %v422
    %v461 = vpack.c.b16 %v425, %v424
    %v462 = vpack.c.b16 %v427, %v426
    %v463 = vpack.c.b16 %v429, %v428
    %v464 = vpack.c.b16 %v431, %v430
    %v465 = vpack.c.b16 %v433, %v432
    %498 = vmatprep.subr.bf16.mxu0 0
    %499 = vmatpush1.bf16.msra.mxu0 %v441
    %500 = vmatprep.subr.bf16.mxu0 0
    %501 = vmatpush1.bf16.msra.mxu0 %v440
    %502 = vmatprep.subr.bf16.mxu0 0
    %503 = vmatpush1.bf16.msra.mxu0 %v439
    %504 = vmatprep.subr.bf16.mxu0 0
    %505 = vmatpush1.bf16.msra.mxu0 %v438
    %506 = vmatprep.subr.bf16.mxu0 0
    %507 = vmatpush1.bf16.msra.mxu0 %v437
    %508 = vmatprep.subr.bf16.mxu0 0
    %509 = vmatpush1.bf16.msra.mxu0 %v436
    %510 = vmatprep.subr.bf16.mxu0 0
    %511 = vmatpush1.bf16.msra.mxu0 %v435
    %512 = vmatprep.subr.bf16.mxu0 0
    %513 = vmatpush1.bf16.msra.mxu0 %v434
    %514 = vmatprep.subr.bf16.mxu0 0
    %515 = vmatpush2.bf16.msra.mxu0 %v449
    %516 = vmatprep.subr.bf16.mxu0 0
    %517 = vmatpush2.bf16.msra.mxu0 %v448
    %518 = vmatprep.subr.bf16.mxu0 0
    %519 = vmatpush2.bf16.msra.mxu0 %v447
    %520 = vmatprep.subr.bf16.mxu0 0
    %521 = vmatpush2.bf16.msra.mxu0 %v446
    %522 = vmatprep.subr.bf16.mxu0 0
    %523 = vmatpush2.bf16.msra.mxu0 %v445
    %524 = vmatprep.subr.bf16.mxu0 0
    %525 = vmatpush2.bf16.msra.mxu0 %v444
    %526 = vmatprep.subr.bf16.mxu0 0
    %527 = vmatpush2.bf16.msra.mxu0 %v443
    %528 = vmatprep.subr.bf16.mxu0 0
    %529 = vmatpush2.bf16.msra.mxu0 %v442
    %530 = vmatprep.mubr.bf16.mxu0 %v232
    %531 = vmatmul.mubr.bf16.gmra.mxu0 %v231
    %v532 = vpop.f32.mrf.mxu0
    %v533 = vadd.f32 %v304, %v532
    %v534 = vpop.f32.mrf.mxu0
    %v535 = vpop.f32.mrf.mxu0
    %v536 = vpop.f32.mrf.mxu0
    %537 = vdwg.mxu0
    %538 = vmatprep.subr.bf16.mxu0 0
    %539 = vmatpush1.bf16.msra.mxu0 %v457
    %540 = vmatprep.subr.bf16.mxu0 0
    %541 = vmatpush1.bf16.msra.mxu0 %v456
    %542 = vmatprep.subr.bf16.mxu0 0
    %543 = vmatpush1.bf16.msra.mxu0 %v455
    %544 = vmatprep.subr.bf16.mxu0 0
    %545 = vmatpush1.bf16.msra.mxu0 %v454
    %546 = vmatprep.subr.bf16.mxu0 0
    %547 = vmatpush1.bf16.msra.mxu0 %v453
    %548 = vmatprep.subr.bf16.mxu0 0
    %549 = vmatpush1.bf16.msra.mxu0 %v452
    %550 = vmatprep.subr.bf16.mxu0 0
    %551 = vmatpush1.bf16.msra.mxu0 %v451
    %552 = vmatprep.subr.bf16.mxu0 0
    %553 = vmatpush1.bf16.msra.mxu0 %v450
    %554 = vmatprep.subr.bf16.mxu0 0
    %555 = vmatpush2.bf16.msra.mxu0 %v465
    %556 = vmatprep.subr.bf16.mxu0 0
    %557 = vmatpush2.bf16.msra.mxu0 %v464
    %558 = vmatprep.subr.bf16.mxu0 0
    %559 = vmatpush2.bf16.msra.mxu0 %v463
    %560 = vmatprep.subr.bf16.mxu0 0
    %561 = vmatpush2.bf16.msra.mxu0 %v462
    %562 = vmatprep.subr.bf16.mxu0 0
    %563 = vmatpush2.bf16.msra.mxu0 %v461
    %564 = vmatprep.subr.bf16.mxu0 0
    %565 = vmatpush2.bf16.msra.mxu0 %v460
    %566 = vmatprep.subr.bf16.mxu0 0
    %567 = vmatpush2.bf16.msra.mxu0 %v459
    %568 = vmatprep.subr.bf16.mxu0 0
    %569 = vmatpush2.bf16.msra.mxu0 %v458
    %570 = vmatprep.mubr.bf16.mxu0 %v234
    %571 = vmatmul.mubr.bf16.gmra.mxu0 %v233
    %v572 = vpop.f32.mrf.mxu0
    %v573 = vadd.f32 %v533, %v572
    %v574 = vpop.f32.mrf.mxu0
    %v575 = vpop.f32.mrf.mxu0
    %v576 = vpop.f32.mrf.mxu0
    %577 = vdwg.mxu0
    %578 = vst [vmem:[#allocation2] sm:$0x3] %v573
    // Predicated region
    $region22: #{dqn_forward.7} parent=1 // pred_check
      _
    $region23: #{dqn_forward.7} parent=1 // pred_check_branch
      %580 = sbr.rel (0) target = $region25
    $region24: #{dqn_forward.7} parent=1 // pred_region
      %s582 = ssub.s32 32, 32
      %583 = vsyncadd [#allocation3], %s582
      %s585 = sshll.u32 [#allocation2], 4
      %s586 = int_to_ptr.vmem [resolvable:$true] %s585
      %588 = dma.vmem_to_hbm [thread:$0]  %s586, 32, %s5, [#allocation3]
    $region25: #{dqn_forward.7} parent=1 // pred_fallthru
      _
    // Predicated region
    $region26: #{dqn_forward.7} parent=1 // pred_check
      _
    $region27: #{dqn_forward.7} parent=1 // pred_check_branch
      %590 = sbr.rel (0) target = $region29
    $region28: #{dqn_forward.7} parent=1 // pred_region
      %591 = dma.done [#allocation3], 32
    $region29: #{dqn_forward.7} parent=1 // pred_fallthru
      _
    %592 = vsyncpa [#allocation3], 1

</llo_original>
